<compile_context>
chip_gen: v5e
topology: v5e:2x2
jax: 0.10.0
libtpu: 0.0.40
codegen_flags: <defaults>
</compile_context>

<pallas_src>
import functools

import jax
import jax.numpy as jnp
from jax.experimental import pallas as pl
from jax.experimental.pallas import tpu as pltpu

H1 = 400     # hidden-1 of the PyTorch module (nn.Linear(., 400))
H1P = 512    # hidden-1 padded to a lane-aligned width (zero pad -> exact math)
H2 = 300     # hidden-2 (nn.Linear(400, 300))
H2P = 384    # hidden-2 padded to 3 full vregs (zero pad -> exact math, same MXU passes)


def _critic_kernel(s_ref, a_ref, w14_ref, b14_ref,
                   w2_ref, b2_ref, w5_ref, b5_ref,
                   w3_ref, w6_ref, b36_ref, q_ref):
    """One batch tile: both Q heads; all weights VMEM-resident (constant index_maps)."""
    cdt = w14_ref.dtype                         # matmul-operand dtype (bf16 by default)

    # In-kernel concat of the already-loaded VMEM tiles (tiny lane splice) so layer 1
    # is a single K=(state+action) matmul over the fused twin-head weight.
    x = jnp.concatenate([s_ref[...].astype(cdt), a_ref[...].astype(cdt)], axis=-1)

    # Layer 1, both heads fused along output lanes ([:, :H1P]=head1, [:, H1P:]=head2).
    # Bias + ReLU + downcast fused: the [TB, 2*H1P] intermediate is stored once, in cdt.
    hg = jnp.maximum(
        jnp.dot(x, w14_ref[...], preferred_element_type=jnp.float32) + b14_ref[...],
        0.0,
    ).astype(cdt)                               # [TB, 2*H1P]

    # Layer 2 per head: the :H1P / H1P: slices are 128-lane aligned -> free vreg
    # sub-selection, no stack / relayout, no batched einsum.
    z1 = jnp.maximum(
        jnp.dot(hg[:, :H1P], w2_ref[...], preferred_element_type=jnp.float32)
        + b2_ref[...], 0.0)                     # [TB, H2P] f32
    z2 = jnp.maximum(
        jnp.dot(hg[:, H1P:], w5_ref[...], preferred_element_type=jnp.float32)
        + b5_ref[...], 0.0)

    # Layer 3 (out_features == 1): VPU multiply + lane reduction instead of N=1 MXU.
    q1 = jnp.sum(z1 * w3_ref[...].astype(jnp.float32), axis=-1, keepdims=True)  # [TB, 1]
    q2 = jnp.sum(z2 * w6_ref[...].astype(jnp.float32), axis=-1, keepdims=True)
    # (TB, 2) output keeps TB on sublanes -> no XLU transpose after the reduction.
    q_ref[...] = (jnp.concatenate([q1, q2], axis=-1) + b36_ref[...]).astype(q_ref.dtype)


def init_critic_params(key, state_dim, action_dim):
    """PyTorch-nn.Linear-like init; weights stored [in, out], biases [1, out]."""
    dims = [
        ("w1", "b1", state_dim + action_dim, H1),
        ("w2", "b2", H1, H2),
        ("w3", "b3", H2, 1),
        ("w4", "b4", state_dim + action_dim, H1),
        ("w5", "b5", H1, H2),
        ("w6", "b6", H2, 1),
    ]
    params = {}
    for wname, bname, fan_in, fan_out in dims:
        key, kw, kb = jax.random.split(key, 3)
        bound = 1.0 / jnp.sqrt(jnp.float32(fan_in))
        params[wname] = jax.random.uniform(
            kw, (fan_in, fan_out), jnp.float32, minval=-bound, maxval=bound)
        params[bname] = jax.random.uniform(
            kb, (1, fan_out), jnp.float32, minval=-bound, maxval=bound)
    return params


def pack_critic_params(params, compute_dtype=jnp.bfloat16):
    """One-time repack: fuse twin heads for layer 1 (unsplit [in, 2*H1P] weight),
    pad hidden dims to lane-aligned widths (400->512, 300->384; zero pad => exact
    math), pre-transpose the scalar output heads, and cast matmul operands to
    `compute_dtype` (bf16 halves weight DMA; pass jnp.float32 for exact-parity f32
    math — activations follow the weight dtype inside the kernel)."""
    def padw(w, rows, cols):
        return jnp.pad(w, ((0, rows - w.shape[0]), (0, cols - w.shape[1])))

    in_dim = params["w1"].shape[0]
    w14 = jnp.concatenate([padw(params["w1"], in_dim, H1P),
                           padw(params["w4"], in_dim, H1P)], axis=1)     # [in, 2*H1P]
    b14 = jnp.concatenate([padw(params["b1"], 1, H1P),
                           padw(params["b4"], 1, H1P)], axis=1)          # [1, 2*H1P]
    return {
        "w14": w14.astype(compute_dtype),
        "b14": b14.astype(jnp.float32),
        "w2": padw(params["w2"], H1P, H2P).astype(compute_dtype),        # [H1P, H2P]
        "b2": padw(params["b2"], 1, H2P).astype(jnp.float32),            # [1, H2P]
        "w5": padw(params["w5"], H1P, H2P).astype(compute_dtype),
        "b5": padw(params["b5"], 1, H2P).astype(jnp.float32),
        "w3": padw(params["w3"].T, 1, H2P).astype(compute_dtype),        # [1, H2P]
        "w6": padw(params["w6"].T, 1, H2P).astype(compute_dtype),
        "b36": jnp.concatenate([params["b3"], params["b6"]],
                               axis=1).astype(jnp.float32),              # [1, 2]
    }


def _round_up(x, m):
    return ((x + m - 1) // m) * m


def _num_tensorcores():
    """v7x exposes 2 TensorCores per chip; v5e/v6e have 1. Tile-policy hint only."""
    try:
        kind = jax.devices()[0].device_kind.lower()
    except Exception:
        return 1
    return 2 if "7" in kind else 1


@functools.partial(jax.jit, static_argnames=("block_batch",))
def critic_forward(state, action, packed, *, block_batch=512):
    """Pallas equivalent of Critic.forward(state, action) -> (q1, q2), each [B, 1].

    Matmul operands (weights AND activations) run in packed['w14'].dtype (bf16 by
    default) with f32 accumulation/bias/ReLU; repack with compute_dtype=jnp.float32
    if tight parity with the f32 reference is required."""
    B, state_dim = state.shape
    action_dim = action.shape[1]
    in_dim = state_dim + action_dim

    # Batch-tile policy:
    #  * v7x (2 TCs): aim for >= 2 grid steps so the "parallel" axis shards cores.
    #  * v5e/v6e (1 TC): largest tile = fewest grid steps / longest MXU M-streams.
    # Edge tiles may contain padded (undefined) input rows; rows are independent and
    # the corresponding output rows are discarded, so the result is exact.
    n_cores = _num_tensorcores()
    if n_cores > 1:
        tile = max(8, _round_up(pl.cdiv(B, n_cores), 8))
    else:
        tile = _round_up(B, 8)
    TB = min(block_batch, tile)
    if TB >= B:
        TB = B                                    # single tile covering the whole batch
    grid = (pl.cdiv(B, TB),)

    param_bytes = sum(int(w.size) * w.dtype.itemsize for w in packed.values())
    cost = pl.CostEstimate(
        flops=2 * B * (in_dim * 2 * H1P + 2 * H1P * H2P + 2 * H2P),
        transcendentals=0,
        bytes_accessed=int(B * in_dim * 4 + param_bytes + B * 2 * 4),
    )

    const = lambda i: (0, 0)
    # NOTE: the resident weight/bias specs (constant index_map) could additionally be
    # marked pipeline_mode=pl.Buffered(1) to drop the redundant second buffer
    # (~0.7 MB VMEM); left at the default buffering for maximum portability.
    q = pl.pallas_call(
        _critic_kernel,
        out_shape=jax.ShapeDtypeStruct((B, 2), jnp.float32),
        grid_spec=pltpu.PrefetchScalarGridSpec(
            num_scalar_prefetch=0,
            grid=grid,
            in_specs=[
                pl.BlockSpec((TB, state_dim), lambda i: (i, 0)),     # streamed
                pl.BlockSpec((TB, action_dim), lambda i: (i, 0)),    # streamed
                pl.BlockSpec((in_dim, 2 * H1P), const),              # resident weights
                pl.BlockSpec((1, 2 * H1P), const),
                pl.BlockSpec((H1P, H2P), const),
                pl.BlockSpec((1, H2P), const),
                pl.BlockSpec((H1P, H2P), const),
                pl.BlockSpec((1, H2P), const),
                pl.BlockSpec((1, H2P), const),
                pl.BlockSpec((1, H2P), const),
                pl.BlockSpec((1, 2), const),
            ],
            out_specs=pl.BlockSpec((TB, 2), lambda i: (i, 0)),
        ),
        compiler_params=pltpu.CompilerParams(
            dimension_semantics=("parallel",),
            vmem_limit_bytes=48 * 1024 * 1024,   # headroom for bigger tiles, < v7x 64 MiB
        ),
        cost_estimate=cost,
    )(state, action,
      packed["w14"], packed["b14"],
      packed["w2"], packed["b2"], packed["w5"], packed["b5"],
      packed["w3"], packed["w6"], packed["b36"])

    return q[:, 0:1], q[:, 1:2]


def _reference_forward(state, action, params):
    """Pure-JAX f32 reference mirroring the PyTorch module."""
    x = jnp.concatenate([state, action], axis=1)
    h = jax.nn.relu(x @ params["w1"] + params["b1"])
    h = jax.nn.relu(h @ params["w2"] + params["b2"])
    q1 = h @ params["w3"] + params["b3"]
    g = jax.nn.relu(x @ params["w4"] + params["b4"])
    g = jax.nn.relu(g @ params["w5"] + params["b5"])
    q2 = g @ params["w6"] + params["b6"]
    return q1, q2


if __name__ == "__main__":
    state_dim, action_dim, batch = 16, 8, 8

    key = jax.random.PRNGKey(0)
    key, ks, ka = jax.random.split(key, 3)
    state = jax.random.normal(ks, (batch, state_dim), jnp.float32)
    action = jax.random.normal(ka, (batch, action_dim), jnp.float32)

    params = init_critic_params(key, state_dim, action_dim)
    packed = pack_critic_params(params)      # one-time repack (bf16 matmul operands)

    q1, q2 = critic_forward(state, action, packed)
    jax.block_until_ready((q1, q2))

    r1, r2 = _reference_forward(state, action, params)
    assert q1.shape == (batch, 1) and q2.shape == (batch, 1)
    # bf16 matmul operands with f32 accumulation -> loosened tolerance vs f32 reference.
    assert jnp.allclose(q1, r1, atol=5e-2, rtol=5e-2), float(jnp.max(jnp.abs(q1 - r1)))
    assert jnp.allclose(q2, r2, atol=5e-2, rtol=5e-2), float(jnp.max(jnp.abs(q2 - r2)))

    print("KERNEL_OK")
</pallas_src>

<mosaic_0001>
module attributes {stable_mosaic.version = 11 : i64} {
  func.func @_critic_kernel(%arg0: i32, %arg1: memref<8x16xf32, #tpu.memory_space<vmem>>, %arg2: memref<8x8xf32, #tpu.memory_space<vmem>>, %arg3: memref<24x1024xbf16, #tpu.memory_space<vmem>>, %arg4: memref<1x1024xf32, #tpu.memory_space<vmem>>, %arg5: memref<512x384xbf16, #tpu.memory_space<vmem>>, %arg6: memref<1x384xf32, #tpu.memory_space<vmem>>, %arg7: memref<512x384xbf16, #tpu.memory_space<vmem>>, %arg8: memref<1x384xf32, #tpu.memory_space<vmem>>, %arg9: memref<1x384xbf16, #tpu.memory_space<vmem>>, %arg10: memref<1x384xbf16, #tpu.memory_space<vmem>>, %arg11: memref<1x2xf32, #tpu.memory_space<vmem>>, %arg12: memref<8x2xf32, #tpu.memory_space<vmem>>) attributes {dimension_semantics = [#tpu.dimension_semantics<parallel>], iteration_bounds = array<i64: 1>, scalar_prefetch = 0 : i64, scratch_operands = 0 : i64, tpu.core_type = #tpu.core_type<tc>, window_params = [{transform_indices = @transform_0, window_bounds = array<i64: 8, 16>}, {transform_indices = @transform_1, window_bounds = array<i64: 8, 8>}, {pipeline_mode = #tpu.pipeline_mode<synchronous>, transform_indices = @transform_2, window_bounds = array<i64: 24, 1024>}, {pipeline_mode = #tpu.pipeline_mode<synchronous>, transform_indices = @transform_3, window_bounds = array<i64: 1, 1024>}, {pipeline_mode = #tpu.pipeline_mode<synchronous>, transform_indices = @transform_4, window_bounds = array<i64: 512, 384>}, {pipeline_mode = #tpu.pipeline_mode<synchronous>, transform_indices = @transform_5, window_bounds = array<i64: 1, 384>}, {pipeline_mode = #tpu.pipeline_mode<synchronous>, transform_indices = @transform_6, window_bounds = array<i64: 512, 384>}, {pipeline_mode = #tpu.pipeline_mode<synchronous>, transform_indices = @transform_7, window_bounds = array<i64: 1, 384>}, {pipeline_mode = #tpu.pipeline_mode<synchronous>, transform_indices = @transform_8, window_bounds = array<i64: 1, 384>}, {pipeline_mode = #tpu.pipeline_mode<synchronous>, transform_indices = @transform_9, window_bounds = array<i64: 1, 384>}, {pipeline_mode = #tpu.pipeline_mode<synchronous>, transform_indices = @transform_10, window_bounds = array<i64: 1, 2>}, {transform_indices = @transform_11, window_bounds = array<i64: 8, 2>}]} {
    %c0 = arith.constant 0 : index
    %c0_0 = arith.constant 0 : index
    %0 = vector.load %arg1[%c0, %c0_0] : memref<8x16xf32, #tpu.memory_space<vmem>>, vector<8x16xf32>
    %1 = arith.truncf %0 : vector<8x16xf32> to vector<8x16xbf16>
    %c0_1 = arith.constant 0 : index
    %c0_2 = arith.constant 0 : index
    %2 = vector.load %arg2[%c0_1, %c0_2] : memref<8x8xf32, #tpu.memory_space<vmem>>, vector<8x8xf32>
    %3 = arith.truncf %2 : vector<8x8xf32> to vector<8x8xbf16>
    %4 = tpu.concatenate %1, %3 in 1 : vector<8x16xbf16>, vector<8x8xbf16> -> vector<8x24xbf16>
    %c0_3 = arith.constant 0 : index
    %c0_4 = arith.constant 0 : index
    %5 = vector.load %arg3[%c0_3, %c0_4] : memref<24x1024xbf16, #tpu.memory_space<vmem>>, vector<24x1024xbf16>
    %cst = arith.constant dense<0.000000e+00> : vector<8x1024xf32>
    %6 = tpu.matmul %4, %5, %cst {dimension_numbers = #tpu.dot_dimension_numbers<[1], [0], [0], [1], [0, 0, 1, 1], [], []>} : vector<8x24xbf16>, vector<24x1024xbf16>, vector<8x1024xf32> -> vector<8x1024xf32>
    %c0_5 = arith.constant 0 : index
    %c0_6 = arith.constant 0 : index
    %7 = vector.load %arg4[%c0_5, %c0_6] : memref<1x1024xf32, #tpu.memory_space<vmem>>, vector<1x1024xf32>
    %8 = vector.broadcast %7 : vector<1x1024xf32> to vector<8x1024xf32>
    %9 = arith.addf %6, %8 : vector<8x1024xf32>
    %cst_7 = arith.constant 0.000000e+00 : f32
    %10 = vector.broadcast %cst_7 : f32 to vector<8x1024xf32>
    %11 = arith.maximumf %9, %10 : vector<8x1024xf32>
    %12 = arith.truncf %11 : vector<8x1024xf32> to vector<8x1024xbf16>
    %13 = vector.extract_strided_slice %12 {offsets = [0, 0], sizes = [8, 512], strides = [1, 1]} : vector<8x1024xbf16> to vector<8x512xbf16>
    %c0_8 = arith.constant 0 : index
    %c0_9 = arith.constant 0 : index
    %14 = vector.load %arg5[%c0_8, %c0_9] : memref<512x384xbf16, #tpu.memory_space<vmem>>, vector<512x384xbf16>
    %cst_10 = arith.constant dense<0.000000e+00> : vector<8x384xf32>
    %15 = tpu.matmul %13, %14, %cst_10 {dimension_numbers = #tpu.dot_dimension_numbers<[1], [0], [0], [1], [0, 0, 1, 1], [], []>} : vector<8x512xbf16>, vector<512x384xbf16>, vector<8x384xf32> -> vector<8x384xf32>
    %c0_11 = arith.constant 0 : index
    %c0_12 = arith.constant 0 : index
    %16 = vector.load %arg6[%c0_11, %c0_12] : memref<1x384xf32, #tpu.memory_space<vmem>>, vector<1x384xf32>
    %17 = vector.broadcast %16 : vector<1x384xf32> to vector<8x384xf32>
    %18 = arith.addf %15, %17 : vector<8x384xf32>
    %cst_13 = arith.constant 0.000000e+00 : f32
    %19 = vector.broadcast %cst_13 : f32 to vector<8x384xf32>
    %20 = arith.maximumf %18, %19 : vector<8x384xf32>
    %21 = vector.extract_strided_slice %12 {offsets = [0, 512], sizes = [8, 512], strides = [1, 1]} : vector<8x1024xbf16> to vector<8x512xbf16>
    %c0_14 = arith.constant 0 : index
    %c0_15 = arith.constant 0 : index
    %22 = vector.load %arg7[%c0_14, %c0_15] : memref<512x384xbf16, #tpu.memory_space<vmem>>, vector<512x384xbf16>
    %cst_16 = arith.constant dense<0.000000e+00> : vector<8x384xf32>
    %23 = tpu.matmul %21, %22, %cst_16 {dimension_numbers = #tpu.dot_dimension_numbers<[1], [0], [0], [1], [0, 0, 1, 1], [], []>} : vector<8x512xbf16>, vector<512x384xbf16>, vector<8x384xf32> -> vector<8x384xf32>
    %c0_17 = arith.constant 0 : index
    %c0_18 = arith.constant 0 : index
    %24 = vector.load %arg8[%c0_17, %c0_18] : memref<1x384xf32, #tpu.memory_space<vmem>>, vector<1x384xf32>
    %25 = vector.broadcast %24 : vector<1x384xf32> to vector<8x384xf32>
    %26 = arith.addf %23, %25 : vector<8x384xf32>
    %cst_19 = arith.constant 0.000000e+00 : f32
    %27 = vector.broadcast %cst_19 : f32 to vector<8x384xf32>
    %28 = arith.maximumf %26, %27 : vector<8x384xf32>
    %c0_20 = arith.constant 0 : index
    %c0_21 = arith.constant 0 : index
    %29 = vector.load %arg9[%c0_20, %c0_21] : memref<1x384xbf16, #tpu.memory_space<vmem>>, vector<1x384xbf16>
    %30 = arith.extf %29 : vector<1x384xbf16> to vector<1x384xf32>
    %31 = vector.broadcast %30 : vector<1x384xf32> to vector<8x384xf32>
    %32 = arith.mulf %20, %31 : vector<8x384xf32>
    %cst_22 = arith.constant dense<0.000000e+00> : vector<8xf32>
    %33 = vector.multi_reduction <add>, %32, %cst_22 [1] : vector<8x384xf32> to vector<8xf32>
    %34 = vector.shape_cast %33 : vector<8xf32> to vector<8x1xf32>
    %c0_23 = arith.constant 0 : index
    %c0_24 = arith.constant 0 : index
    %35 = vector.load %arg10[%c0_23, %c0_24] : memref<1x384xbf16, #tpu.memory_space<vmem>>, vector<1x384xbf16>
    %36 = arith.extf %35 : vector<1x384xbf16> to vector<1x384xf32>
    %37 = vector.broadcast %36 : vector<1x384xf32> to vector<8x384xf32>
    %38 = arith.mulf %28, %37 : vector<8x384xf32>
    %cst_25 = arith.constant dense<0.000000e+00> : vector<8xf32>
    %39 = vector.multi_reduction <add>, %38, %cst_25 [1] : vector<8x384xf32> to vector<8xf32>
    %40 = vector.shape_cast %39 : vector<8xf32> to vector<8x1xf32>
    %41 = tpu.concatenate %34, %40 in 1 : vector<8x1xf32>, vector<8x1xf32> -> vector<8x2xf32>
    %c0_26 = arith.constant 0 : index
    %c0_27 = arith.constant 0 : index
    %42 = vector.load %arg11[%c0_26, %c0_27] : memref<1x2xf32, #tpu.memory_space<vmem>>, vector<1x2xf32>
    %43 = vector.broadcast %42 : vector<1x2xf32> to vector<8x2xf32>
    %44 = arith.addf %41, %43 : vector<8x2xf32>
    %c0_28 = arith.constant 0 : index
    %c0_29 = arith.constant 0 : index
    %45 = vector.load %arg12[%c0_28, %c0_29] : memref<8x2xf32, #tpu.memory_space<vmem>>, vector<8x2xf32>
    tpu.vector_store %arg12[%c0_28, %c0_29], %44 {strides = array<i32>} : memref<8x2xf32, #tpu.memory_space<vmem>>, vector<8x2xf32>,
    return
  }
  func.func @transform_0(%arg0: i32) -> (i32, i32) {
    %c0_i32 = arith.constant 0 : i32
    %c0_i32_0 = arith.constant 0 : i32
    return %arg0, %c0_i32 : i32, i32
  }
  func.func @transform_1(%arg0: i32) -> (i32, i32) {
    %c0_i32 = arith.constant 0 : i32
    %c0_i32_0 = arith.constant 0 : i32
    return %arg0, %c0_i32 : i32, i32
  }
  func.func @transform_2(%arg0: i32) -> (i32, i32) {
    %c0_i32 = arith.constant 0 : i32
    %c0_i32_0 = arith.constant 0 : i32
    %c0_i32_1 = arith.constant 0 : i32
    return %c0_i32, %c0_i32_0 : i32, i32
  }
  func.func @transform_3(%arg0: i32) -> (i32, i32) {
    %c0_i32 = arith.constant 0 : i32
    %c0_i32_0 = arith.constant 0 : i32
    %c0_i32_1 = arith.constant 0 : i32
    return %c0_i32, %c0_i32_0 : i32, i32
  }
  func.func @transform_4(%arg0: i32) -> (i32, i32) {
    %c0_i32 = arith.constant 0 : i32
    %c0_i32_0 = arith.constant 0 : i32
    %c0_i32_1 = arith.constant 0 : i32
    return %c0_i32, %c0_i32_0 : i32, i32
  }
  func.func @transform_5(%arg0: i32) -> (i32, i32) {
    %c0_i32 = arith.constant 0 : i32
    %c0_i32_0 = arith.constant 0 : i32
    %c0_i32_1 = arith.constant 0 : i32
    return %c0_i32, %c0_i32_0 : i32, i32
  }
  func.func @transform_6(%arg0: i32) -> (i32, i32) {
    %c0_i32 = arith.constant 0 : i32
    %c0_i32_0 = arith.constant 0 : i32
    %c0_i32_1 = arith.constant 0 : i32
    return %c0_i32, %c0_i32_0 : i32, i32
  }
  func.func @transform_7(%arg0: i32) -> (i32, i32) {
    %c0_i32 = arith.constant 0 : i32
    %c0_i32_0 = arith.constant 0 : i32
    %c0_i32_1 = arith.constant 0 : i32
    return %c0_i32, %c0_i32_0 : i32, i32
  }
  func.func @transform_8(%arg0: i32) -> (i32, i32) {
    %c0_i32 = arith.constant 0 : i32
    %c0_i32_0 = arith.constant 0 : i32
    %c0_i32_1 = arith.constant 0 : i32
    return %c0_i32, %c0_i32_0 : i32, i32
  }
  func.func @transform_9(%arg0: i32) -> (i32, i32) {
    %c0_i32 = arith.constant 0 : i32
    %c0_i32_0 = arith.constant 0 : i32
    %c0_i32_1 = arith.constant 0 : i32
    return %c0_i32, %c0_i32_0 : i32, i32
  }
  func.func @transform_10(%arg0: i32) -> (i32, i32) {
    %c0_i32 = arith.constant 0 : i32
    %c0_i32_0 = arith.constant 0 : i32
    %c0_i32_1 = arith.constant 0 : i32
    return %c0_i32, %c0_i32_0 : i32, i32
  }
  func.func @transform_11(%arg0: i32) -> (i32, i32) {
    %c0_i32 = arith.constant 0 : i32
    %c0_i32_0 = arith.constant 0 : i32
    return %arg0, %c0_i32 : i32, i32
  }
}

</mosaic_0001>

<llo_original>
// kernel: critic_forward.1
$region0: #{critic_forward.1}
  #allocation0 [shape = 'u32[]', space=smem, size = 0x4, offset = 0x4, fixed_abs, tag = 'smem constant byte address 0x4 - core index']
  #allocation1 [shape = 'u32[72,128]{1,0:T(1,128)}', space=vmem, size = 0x9000, scoped, tag = 'internal scratch']
  %s0 = inlined_call_operand.hbm [shape: f32[8,16], index: 0, kind: input, shape index: {}]
  %s1 = inlined_call_operand.hbm [shape: f32[8,8], index: 1, kind: input, shape index: {}]
  %s2 = inlined_call_operand.hbm [shape: bf16[24,1024], index: 2, kind: input, shape index: {}]
  %s3 = inlined_call_operand.hbm [shape: f32[1,1024], index: 3, kind: input, shape index: {}]
  %s4 = inlined_call_operand.hbm [shape: bf16[512,384], index: 4, kind: input, shape index: {}]
  %s5 = inlined_call_operand.hbm [shape: f32[1,384], index: 5, kind: input, shape index: {}]
  %s6 = inlined_call_operand.hbm [shape: bf16[512,384], index: 6, kind: input, shape index: {}]
  %s7 = inlined_call_operand.vmem [shape: f32[1,384], index: 7, kind: input, shape index: {}]
  %s8 = inlined_call_operand.vmem [shape: bf16[1,384], index: 8, kind: input, shape index: {}]
  %s9 = inlined_call_operand.vmem [shape: bf16[1,384], index: 9, kind: input, shape index: {}]
  %s10 = inlined_call_operand.hbm [shape: f32[1,2], index: 10, kind: input, shape index: {}]
  %s11 = inlined_call_operand.vmem [shape: f32[8,2], index: 11, kind: output, shape index: {}]
  %s12 = sld [smem:[#allocation0]]
  $region86: #{critic_forward.1} parent=0
    _
  %s14 = ssub.s32 1, %s12
  %s15 = scalar_select 0, %s14, %s12
  $region1: #{critic_forward.1} parent=0
    #allocation2 [shape = 'u8[4096]{0}', space=vmem, size = 0x1000, scoped, tag = 'input window, operand 0, single buffered']
    #allocation3 [shape = 's32[1]{0}', space=sflag, size = 0x4, scoped, tag = 'scoped memory for critic_forward.1']
    #allocation4 [shape = 'u8[4096]{0}', space=vmem, size = 0x1000, scoped, tag = 'input window, operand 1, single buffered']
    #allocation5 [shape = 's32[1]{0}', space=sflag, size = 0x4, scoped, tag = 'scoped memory for critic_forward.1']
    #allocation6 [shape = 'u8[49152]{0}', space=vmem, size = 0xc000, scoped, tag = 'input window, operand 2, single buffered']
    #allocation7 [shape = 'u8[4096]{0}', space=vmem, size = 0x1000, scoped, tag = 'input window, operand 3, single buffered']
    #allocation8 [shape = 's32[1]{0}', space=sflag, size = 0x4, scoped, tag = 'scoped memory for critic_forward.1']
    #allocation9 [shape = 'u8[393216]{0}', space=vmem, size = 0x60000, scoped, tag = 'input window, operand 4, single buffered']
    #allocation10 [shape = 'u8[1536]{0}', space=vmem, size = 0x800, scoped, tag = 'input window, operand 5, single buffered']
    #allocation11 [shape = 's32[1]{0}', space=sflag, size = 0x4, scoped, tag = 'scoped memory for critic_forward.1']
    #allocation12 [shape = 'u8[393216]{0}', space=vmem, size = 0x60000, scoped, tag = 'input window, operand 6, single buffered']
    #allocation13 [shape = 'u8[512]{0}', space=vmem, size = 0x400, scoped, tag = 'input window, operand 10, single buffered']
    #allocation14 [shape = 's32[1]{0}', space=sflag, size = 0x4, scoped, tag = 'scoped memory for critic_forward.1']
    %16 = vsyncpa [#allocation3], 0
    %17 = vsyncpa [#allocation5], 0
    %18 = vsyncpa [#allocation8], 0
    %19 = vsyncpa [#allocation11], 0
    %20 = vsyncpa [#allocation14], 0
    // Predicated region
    $region2: #{critic_forward.1} parent=1 // pred_check
      _
    $region3: #{critic_forward.1} parent=1 // pred_check_branch
      %22 = sbr.rel (0) target = $region5
    $region4: #{critic_forward.1} parent=1 // pred_region
      %24 = vsyncadd [#allocation3], 0
      %s26 = sshll.u32 %s0, 4
      %s27 = int_to_ptr.hbm [resolvable:$true] %s26
      %s28 = sshll.u32 [#allocation2], 4
      %s29 = int_to_ptr.vmem [resolvable:$true] %s28
      %31 = dma.hbm_to_vmem [thread:$0]  %s27, 128, %s29, [#allocation3]
    $region5: #{critic_forward.1} parent=1 // pred_fallthru
      _
    // Predicated region
    $region6: #{critic_forward.1} parent=1 // pred_check
      _
    $region7: #{critic_forward.1} parent=1 // pred_check_branch
      %33 = sbr.rel (0) target = $region9
    $region8: #{critic_forward.1} parent=1 // pred_region
      %35 = vsyncadd [#allocation5], 0
      %s37 = sshll.u32 %s1, 4
      %s38 = int_to_ptr.hbm [resolvable:$true] %s37
      %s39 = sshll.u32 [#allocation4], 4
      %s40 = int_to_ptr.vmem [resolvable:$true] %s39
      %42 = dma.hbm_to_vmem [thread:$0]  %s38, 128, %s40, [#allocation5]
    $region9: #{critic_forward.1} parent=1 // pred_fallthru
      _
    // Predicated region
    $region10: #{critic_forward.1} parent=1 // pred_check
      _
    $region11: #{critic_forward.1} parent=1 // pred_check_branch
      %44 = sbr.rel (0) target = $region13
    $region12: #{critic_forward.1} parent=1 // pred_region
      %46 = vsyncadd [#allocation5], 0
      %s47 = sshll.u32 %s2, 4
      %s48 = int_to_ptr.hbm [resolvable:$true] %s47
      %s49 = sshll.u32 [#allocation6], 4
      %s50 = int_to_ptr.vmem [resolvable:$true] %s49
      %55 = dma.hbm_to_vmem [thread:$0]  %s48, 1536, %s50, [#allocation5], 512, 512, 32
    $region13: #{critic_forward.1} parent=1 // pred_fallthru
      _
    // Predicated region
    $region14: #{critic_forward.1} parent=1 // pred_check
      _
    $region15: #{critic_forward.1} parent=1 // pred_check_branch
      %57 = sbr.rel (0) target = $region17
    $region16: #{critic_forward.1} parent=1 // pred_region
      %59 = vsyncadd [#allocation8], 0
      %s61 = sshll.u32 %s3, 4
      %s62 = int_to_ptr.hbm [resolvable:$true] %s61
      %s63 = sshll.u32 [#allocation7], 4
      %s64 = int_to_ptr.vmem [resolvable:$true] %s63
      %66 = dma.hbm_to_vmem [thread:$0]  %s62, 128, %s64, [#allocation8]
    $region17: #{critic_forward.1} parent=1 // pred_fallthru
      _
    // Predicated region
    $region18: #{critic_forward.1} parent=1 // pred_check
      _
    $region19: #{critic_forward.1} parent=1 // pred_check_branch
      %68 = sbr.rel (0) target = $region21
    $region20: #{critic_forward.1} parent=1 // pred_region
      %70 = vsyncadd [#allocation8], 0
      %s71 = sshll.u32 %s4, 4
      %s72 = int_to_ptr.hbm [resolvable:$true] %s71
      %s73 = sshll.u32 [#allocation9], 4
      %s74 = int_to_ptr.vmem [resolvable:$true] %s73
      %79 = dma.hbm_to_vmem [thread:$0]  %s72, 12288, %s74, [#allocation8], 192, 192, 12
    $region21: #{critic_forward.1} parent=1 // pred_fallthru
      _
    // Predicated region
    $region22: #{critic_forward.1} parent=1 // pred_check
      _
    $region23: #{critic_forward.1} parent=1 // pred_check_branch
      %81 = sbr.rel (0) target = $region25
    $region24: #{critic_forward.1} parent=1 // pred_region
      %83 = vsyncadd [#allocation11], 0
      %s85 = sshll.u32 %s5, 4
      %s86 = int_to_ptr.hbm [resolvable:$true] %s85
      %s87 = sshll.u32 [#allocation10], 4
      %s88 = int_to_ptr.vmem [resolvable:$true] %s87
      %90 = dma.hbm_to_vmem [thread:$0]  %s86, 48, %s88, [#allocation11]
    $region25: #{critic_forward.1} parent=1 // pred_fallthru
      _
    // Predicated region
    $region26: #{critic_forward.1} parent=1 // pred_check
      _
    $region27: #{critic_forward.1} parent=1 // pred_check_branch
      %92 = sbr.rel (0) target = $region29
    $region28: #{critic_forward.1} parent=1 // pred_region
      %94 = vsyncadd [#allocation11], 0
      %s95 = sshll.u32 %s6, 4
      %s96 = int_to_ptr.hbm [resolvable:$true] %s95
      %s97 = sshll.u32 [#allocation12], 4
      %s98 = int_to_ptr.vmem [resolvable:$true] %s97
      %103 = dma.hbm_to_vmem [thread:$0]  %s96, 12288, %s98, [#allocation11], 192, 192, 12
    $region29: #{critic_forward.1} parent=1 // pred_fallthru
      _
    // Predicated region
    $region30: #{critic_forward.1} parent=1 // pred_check
      _
    $region31: #{critic_forward.1} parent=1 // pred_check_branch
      %105 = sbr.rel (0) target = $region33
    $region32: #{critic_forward.1} parent=1 // pred_region
      _
    $region33: #{critic_forward.1} parent=1 // pred_fallthru
      _
    // Predicated region
    $region34: #{critic_forward.1} parent=1 // pred_check
      _
    $region35: #{critic_forward.1} parent=1 // pred_check_branch
      %107 = sbr.rel (0) target = $region37
    $region36: #{critic_forward.1} parent=1 // pred_region
      _
    $region37: #{critic_forward.1} parent=1 // pred_fallthru
      _
    // Predicated region
    $region38: #{critic_forward.1} parent=1 // pred_check
      _
    $region39: #{critic_forward.1} parent=1 // pred_check_branch
      %109 = sbr.rel (0) target = $region41
    $region40: #{critic_forward.1} parent=1 // pred_region
      _
    $region41: #{critic_forward.1} parent=1 // pred_fallthru
      _
    // Predicated region
    $region42: #{critic_forward.1} parent=1 // pred_check
      _
    $region43: #{critic_forward.1} parent=1 // pred_check_branch
      %111 = sbr.rel (0) target = $region45
    $region44: #{critic_forward.1} parent=1 // pred_region
      %113 = vsyncadd [#allocation14], 0
      %s115 = sshll.u32 %s10, 4
      %s116 = int_to_ptr.hbm [resolvable:$true] %s115
      %s117 = sshll.u32 [#allocation13], 4
      %s118 = int_to_ptr.vmem [resolvable:$true] %s117
      %120 = dma.hbm_to_vmem [thread:$0]  %s116, 16, %s118, [#allocation14]
    $region45: #{critic_forward.1} parent=1 // pred_fallthru
      _
    // Predicated region
    $region46: #{critic_forward.1} parent=1 // pred_check
      _
    $region47: #{critic_forward.1} parent=1 // pred_check_branch
      %122 = sbr.rel (0) target = $region49
    $region48: #{critic_forward.1} parent=1 // pred_region
      %124 = dma.done [#allocation3], 128
    $region49: #{critic_forward.1} parent=1 // pred_fallthru
      _
    // Predicated region
    $region50: #{critic_forward.1} parent=1 // pred_check
      _
    $region51: #{critic_forward.1} parent=1 // pred_check_branch
      %126 = sbr.rel (0) target = $region53
    $region52: #{critic_forward.1} parent=1 // pred_region
      %128 = dma.done [#allocation5], 128
    $region53: #{critic_forward.1} parent=1 // pred_fallthru
      _
    // Predicated region
    $region54: #{critic_forward.1} parent=1 // pred_check
      _
    $region55: #{critic_forward.1} parent=1 // pred_check_branch
      %130 = sbr.rel (0) target = $region57
    $region56: #{critic_forward.1} parent=1 // pred_region
      %132 = dma.done [#allocation5], 1536
    $region57: #{critic_forward.1} parent=1 // pred_fallthru
      _
    // Predicated region
    $region58: #{critic_forward.1} parent=1 // pred_check
      _
    $region59: #{critic_forward.1} parent=1 // pred_check_branch
      %134 = sbr.rel (0) target = $region61
    $region60: #{critic_forward.1} parent=1 // pred_region
      %136 = dma.done [#allocation8], 128
    $region61: #{critic_forward.1} parent=1 // pred_fallthru
      _
    // Predicated region
    $region62: #{critic_forward.1} parent=1 // pred_check
      _
    $region63: #{critic_forward.1} parent=1 // pred_check_branch
      %138 = sbr.rel (0) target = $region65
    $region64: #{critic_forward.1} parent=1 // pred_region
      %140 = dma.done [#allocation8], 12288
    $region65: #{critic_forward.1} parent=1 // pred_fallthru
      _
    // Predicated region
    $region66: #{critic_forward.1} parent=1 // pred_check
      _
    $region67: #{critic_forward.1} parent=1 // pred_check_branch
      %142 = sbr.rel (0) target = $region69
    $region68: #{critic_forward.1} parent=1 // pred_region
      %144 = dma.done [#allocation11], 48
    $region69: #{critic_forward.1} parent=1 // pred_fallthru
      _
    // Predicated region
    $region70: #{critic_forward.1} parent=1 // pred_check
      _
    $region71: #{critic_forward.1} parent=1 // pred_check_branch
      %146 = sbr.rel (0) target = $region73
    $region72: #{critic_forward.1} parent=1 // pred_region
      %148 = dma.done [#allocation11], 12288
    $region73: #{critic_forward.1} parent=1 // pred_fallthru
      _
    // Predicated region
    $region74: #{critic_forward.1} parent=1 // pred_check
      _
    $region75: #{critic_forward.1} parent=1 // pred_check_branch
      %150 = sbr.rel (0) target = $region77
    $region76: #{critic_forward.1} parent=1 // pred_region
      %152 = dma.done [#allocation14], 16
    $region77: #{critic_forward.1} parent=1 // pred_fallthru
      _
    %v154 = vld [vmem:[#allocation2] sm:$0xff]
    %v155 = vpack.c.bf16 %v154, %v154
    %v156 = vld [vmem:[#allocation4] sm:$0xff]
    %v157 = vpack.c.bf16 %v156, %v156
    %v159 = vunpack.c.l.b16 %v157
    %v160 = vpack.c.b16 %v159, %v159
    %161 = vrot.lane.b32.xlu0 %v160, 16
    %v162 = vpop.permute.xlu0 %161
    %vm163 = vcmask 130048
    %v166 = vsel %vm163, %v155, %v162
    %v167 = vld [vmem:[#allocation6] sm:$0xff]
    %v168 = vld [vmem:[#allocation6 + $0x8] sm:$0xff]
    %v169 = vld [vmem:[#allocation6 + $0x10] sm:$0xff]
    %v170 = vld [vmem:[#allocation6 + $0x18] sm:$0xff]
    %v171 = vld [vmem:[#allocation6 + $0x20] sm:$0xff]
    %v172 = vld [vmem:[#allocation6 + $0x28] sm:$0xff]
    %v173 = vld [vmem:[#allocation6 + $0x30] sm:$0xff]
    %v174 = vld [vmem:[#allocation6 + $0x38] sm:$0xff]
    %v175 = vld [vmem:[#allocation6 + $0x40] sm:$0xff]
    %v176 = vld [vmem:[#allocation6 + $0x48] sm:$0xff]
    %v177 = vld [vmem:[#allocation6 + $0x50] sm:$0xff]
    %v178 = vld [vmem:[#allocation6 + $0x58] sm:$0xff]
    %v179 = vld [vmem:[#allocation7] sm:$0xff]
    %v181 = vperm.slane %v179, 0
    %v182 = vperm.slane %v179, 1
    %v183 = vperm.slane %v179, 2
    %v184 = vperm.slane %v179, 3
    %v185 = vperm.slane %v179, 4
    %v186 = vperm.slane %v179, 5
    %v187 = vperm.slane %v179, 6
    %v188 = vperm.slane %v179, 7
    %v209 = vunpack.c.l.b16 %v167
    %v210 = vunpack.c.h.b16 %v167
    %v211 = vunpack.c.l.b16 %v168
    %v212 = vunpack.c.h.b16 %v168
    %v213 = vunpack.c.l.b16 %v169
    %v214 = vunpack.c.h.b16 %v169
    %v215 = vunpack.c.l.b16 %v170
    %v216 = vunpack.c.h.b16 %v170
    %v217 = vunpack.c.l.b16 %v171
    %v218 = vunpack.c.h.b16 %v171
    %v219 = vunpack.c.l.b16 %v172
    %v220 = vunpack.c.h.b16 %v172
    %v221 = vunpack.c.l.b16 %v173
    %v222 = vunpack.c.h.b16 %v173
    %v223 = vunpack.c.l.b16 %v174
    %v224 = vunpack.c.h.b16 %v174
    %v225 = vunpack.c.l.b16 %v175
    %v226 = vunpack.c.h.b16 %v175
    %v227 = vunpack.c.l.b16 %v176
    %v228 = vunpack.c.h.b16 %v176
    %v229 = vunpack.c.l.b16 %v177
    %v230 = vunpack.c.h.b16 %v177
    %v231 = vunpack.c.l.b16 %v178
    %v232 = vunpack.c.h.b16 %v178
    %v233 = vpack.c.b16 %v217, %v209
    %v234 = vpack.c.b16 %v218, %v210
    %v235 = vpack.c.b16 %v219, %v211
    %v236 = vpack.c.b16 %v220, %v212
    %v237 = vpack.c.b16 %v221, %v213
    %v238 = vpack.c.b16 %v222, %v214
    %v239 = vpack.c.b16 %v223, %v215
    %v240 = vpack.c.b16 %v224, %v216
    %v241 = vpack.c.b16 %v225, %v225
    %v242 = vpack.c.b16 %v226, %v226
    %v243 = vpack.c.b16 %v227, %v227
    %v244 = vpack.c.b16 %v228, %v228
    %v245 = vpack.c.b16 %v229, %v229
    %v246 = vpack.c.b16 %v230, %v230
    %v247 = vpack.c.b16 %v231, %v231
    %v248 = vpack.c.b16 %v232, %v232
    %vm257 = vcmask 195584
    %v258 = vsel %vm257, %v166, 0
    %vm260 = vcmask 1043456
    %v262 = vsel %vm260, %v241, 0
    %v265 = vsel %vm260, %v242, 0
    %v268 = vsel %vm260, %v243, 0
    %v271 = vsel %vm260, %v244, 0
    %v274 = vsel %vm260, %v245, 0
    %v277 = vsel %vm260, %v246, 0
    %v280 = vsel %vm260, %v247, 0
    %v283 = vsel %vm260, %v248, 0
    %285 = vmatpush.bf16.msra.mxu0 0
    %286 = vmatpush.bf16.msra.mxu0 0
    %287 = vmatpush.bf16.msra.mxu0 0
    %288 = vmatpush.bf16.msra.mxu0 0
    %289 = vmatpush.bf16.msra.mxu0 0
    %290 = vmatpush.bf16.msra.mxu0 0
    %291 = vmatpush.bf16.msra.mxu0 %v262
    %292 = vmatpush.bf16.msra.mxu0 %v233
    %293 = vmatmul.bf16.gmra.mxu0 %v258
    %v294 = vpop.f32.mrf.mxu0
    %v295 = vadd.f32 %v181, %v294
    %v296 = vpop.f32.mrf.mxu0
    %297 = vdwg.mxu0
    %298 = vmatpush.bf16.msra.mxu0 0
    %299 = vmatpush.bf16.msra.mxu0 0
    %300 = vmatpush.bf16.msra.mxu0 0
    %301 = vmatpush.bf16.msra.mxu0 0
    %302 = vmatpush.bf16.msra.mxu0 0
    %303 = vmatpush.bf16.msra.mxu0 0
    %304 = vmatpush.bf16.msra.mxu0 %v265
    %305 = vmatpush.bf16.msra.mxu0 %v234
    %306 = vmatmul.bf16.gmra.mxu0 %v258
    %v307 = vpop.f32.mrf.mxu0
    %v308 = vadd.f32 %v182, %v307
    %v309 = vpop.f32.mrf.mxu0
    %310 = vdwg.mxu0
    %311 = vmatpush.bf16.msra.mxu0 0
    %312 = vmatpush.bf16.msra.mxu0 0
    %313 = vmatpush.bf16.msra.mxu0 0
    %314 = vmatpush.bf16.msra.mxu0 0
    %315 = vmatpush.bf16.msra.mxu0 0
    %316 = vmatpush.bf16.msra.mxu0 0
    %317 = vmatpush.bf16.msra.mxu0 %v268
    %318 = vmatpush.bf16.msra.mxu0 %v235
    %319 = vmatmul.bf16.gmra.mxu0 %v258
    %v320 = vpop.f32.mrf.mxu0
    %v321 = vadd.f32 %v183, %v320
    %v322 = vpop.f32.mrf.mxu0
    %323 = vdwg.mxu0
    %324 = vmatpush.bf16.msra.mxu0 0
    %325 = vmatpush.bf16.msra.mxu0 0
    %326 = vmatpush.bf16.msra.mxu0 0
    %327 = vmatpush.bf16.msra.mxu0 0
    %328 = vmatpush.bf16.msra.mxu0 0
    %329 = vmatpush.bf16.msra.mxu0 0
    %330 = vmatpush.bf16.msra.mxu0 %v271
    %331 = vmatpush.bf16.msra.mxu0 %v236
    %332 = vmatmul.bf16.gmra.mxu0 %v258
    %v333 = vpop.f32.mrf.mxu0
    %v334 = vadd.f32 %v184, %v333
    %v335 = vpop.f32.mrf.mxu0
    %336 = vdwg.mxu0
    %337 = vmatpush.bf16.msra.mxu0 0
    %338 = vmatpush.bf16.msra.mxu0 0
    %339 = vmatpush.bf16.msra.mxu0 0
    %340 = vmatpush.bf16.msra.mxu0 0
    %341 = vmatpush.bf16.msra.mxu0 0
    %342 = vmatpush.bf16.msra.mxu0 0
    %343 = vmatpush.bf16.msra.mxu0 %v274
    %344 = vmatpush.bf16.msra.mxu0 %v237
    %345 = vmatmul.bf16.gmra.mxu0 %v258
    %v346 = vpop.f32.mrf.mxu0
    %v347 = vadd.f32 %v185, %v346
    %v348 = vpop.f32.mrf.mxu0
    %349 = vdwg.mxu0
    %350 = vmatpush.bf16.msra.mxu0 0
    %351 = vmatpush.bf16.msra.mxu0 0
    %352 = vmatpush.bf16.msra.mxu0 0
    %353 = vmatpush.bf16.msra.mxu0 0
    %354 = vmatpush.bf16.msra.mxu0 0
    %355 = vmatpush.bf16.msra.mxu0 0
    %356 = vmatpush.bf16.msra.mxu0 %v277
    %357 = vmatpush.bf16.msra.mxu0 %v238
    %358 = vmatmul.bf16.gmra.mxu0 %v258
    %v359 = vpop.f32.mrf.mxu0
    %v360 = vadd.f32 %v186, %v359
    %v361 = vpop.f32.mrf.mxu0
    %362 = vdwg.mxu0
    %363 = vmatpush.bf16.msra.mxu0 0
    %364 = vmatpush.bf16.msra.mxu0 0
    %365 = vmatpush.bf16.msra.mxu0 0
    %366 = vmatpush.bf16.msra.mxu0 0
    %367 = vmatpush.bf16.msra.mxu0 0
    %368 = vmatpush.bf16.msra.mxu0 0
    %369 = vmatpush.bf16.msra.mxu0 %v280
    %370 = vmatpush.bf16.msra.mxu0 %v239
    %371 = vmatmul.bf16.gmra.mxu0 %v258
    %v372 = vpop.f32.mrf.mxu0
    %v373 = vadd.f32 %v187, %v372
    %v374 = vpop.f32.mrf.mxu0
    %375 = vdwg.mxu0
    %376 = vmatpush.bf16.msra.mxu0 0
    %377 = vmatpush.bf16.msra.mxu0 0
    %378 = vmatpush.bf16.msra.mxu0 0
    %379 = vmatpush.bf16.msra.mxu0 0
    %380 = vmatpush.bf16.msra.mxu0 0
    %381 = vmatpush.bf16.msra.mxu0 0
    %382 = vmatpush.bf16.msra.mxu0 %v283
    %383 = vmatpush.bf16.msra.mxu0 %v240
    %384 = vmatmul.bf16.gmra.mxu0 %v258
    %v385 = vpop.f32.mrf.mxu0
    %v386 = vadd.f32 %v188, %v385
    %v387 = vpop.f32.mrf.mxu0
    %388 = vdwg.mxu0
    %v389 = vmax.f32 %v295, 0.0
    %v390 = vmax.f32 %v308, 0.0
    %v391 = vmax.f32 %v321, 0.0
    %v392 = vmax.f32 %v334, 0.0
    %v393 = vmax.f32 %v347, 0.0
    %v394 = vmax.f32 %v360, 0.0
    %v395 = vmax.f32 %v373, 0.0
    %v396 = vmax.f32 %v386, 0.0
    %v397 = vpack.c.bf16 %v390, %v389
    %v398 = vpack.c.bf16 %v392, %v391
    %v399 = vpack.c.bf16 %v394, %v393
    %v400 = vpack.c.bf16 %v396, %v395
    %v401 = vld [vmem:[#allocation9] sm:$0xff]
    %v402 = vld [vmem:[#allocation9 + $0x8] sm:$0xf]
    %v403 = vld [vmem:[#allocation9 + $0xc] sm:$0xff]
    %v404 = vld [vmem:[#allocation9 + $0x14] sm:$0xf]
    %v405 = vld [vmem:[#allocation9 + $0x18] sm:$0xff]
    %v406 = vld [vmem:[#allocation9 + $0x20] sm:$0xf]
    %v407 = vld [vmem:[#allocation9 + $0x24] sm:$0xff]
    %v408 = vld [vmem:[#allocation9 + $0x2c] sm:$0xf]
    %v409 = vld [vmem:[#allocation9 + $0x30] sm:$0xff]
    %v410 = vld [vmem:[#allocation9 + $0x38] sm:$0xf]
    %v411 = vld [vmem:[#allocation9 + $0x3c] sm:$0xff]
    %v412 = vld [vmem:[#allocation9 + $0x44] sm:$0xf]
    %v413 = vld [vmem:[#allocation9 + $0x48] sm:$0xff]
    %v414 = vld [vmem:[#allocation9 + $0x50] sm:$0xf]
    %v415 = vld [vmem:[#allocation9 + $0x54] sm:$0xff]
    %v416 = vld [vmem:[#allocation9 + $0x5c] sm:$0xf]
    %v417 = vld [vmem:[#allocation9 + $0x60] sm:$0xff]
    %v418 = vld [vmem:[#allocation9 + $0x68] sm:$0xf]
    %v419 = vld [vmem:[#allocation9 + $0x6c] sm:$0xff]
    %v420 = vld [vmem:[#allocation9 + $0x74] sm:$0xf]
    %v421 = vld [vmem:[#allocation9 + $0x78] sm:$0xff]
    %v422 = vld [vmem:[#allocation9 + $0x80] sm:$0xf]
    %v423 = vld [vmem:[#allocation9 + $0x84] sm:$0xff]
    %v424 = vld [vmem:[#allocation9 + $0x8c] sm:$0xf]
    %v425 = vld [vmem:[#allocation9 + $0x90] sm:$0xff]
    %v426 = vld [vmem:[#allocation9 + $0x98] sm:$0xf]
    %v427 = vld [vmem:[#allocation9 + $0x9c] sm:$0xff]
    %v428 = vld [vmem:[#allocation9 + $0xa4] sm:$0xf]
    %v429 = vld [vmem:[#allocation9 + $0xa8] sm:$0xff]
    %v430 = vld [vmem:[#allocation9 + $0xb0] sm:$0xf]
    %v431 = vld [vmem:[#allocation9 + $0xb4] sm:$0xff]
    %v432 = vld [vmem:[#allocation9 + $0xbc] sm:$0xf]
    %v433 = vld [vmem:[#allocation9 + $0xc0] sm:$0xff]
    %v434 = vld [vmem:[#allocation9 + $0xc8] sm:$0xf]
    %v435 = vld [vmem:[#allocation9 + $0xcc] sm:$0xff]
    %v436 = vld [vmem:[#allocation9 + $0xd4] sm:$0xf]
    %v437 = vld [vmem:[#allocation9 + $0xd8] sm:$0xff]
    %v438 = vld [vmem:[#allocation9 + $0xe0] sm:$0xf]
    %v439 = vld [vmem:[#allocation9 + $0xe4] sm:$0xff]
    %v440 = vld [vmem:[#allocation9 + $0xec] sm:$0xf]
    %v441 = vld [vmem:[#allocation9 + $0xf0] sm:$0xff]
    %v442 = vld [vmem:[#allocation9 + $0xf8] sm:$0xf]
    %v443 = vld [vmem:[#allocation9 + $0xfc] sm:$0xff]
    %v444 = vld [vmem:[#allocation9 + $0x104] sm:$0xf]
    %v445 = vld [vmem:[#allocation9 + $0x108] sm:$0xff]
    %v446 = vld [vmem:[#allocation9 + $0x110] sm:$0xf]
    %v447 = vld [vmem:[#allocation9 + $0x114] sm:$0xff]
    %v448 = vld [vmem:[#allocation9 + $0x11c] sm:$0xf]
    %v449 = vld [vmem:[#allocation9 + $0x120] sm:$0xff]
    %v450 = vld [vmem:[#allocation9 + $0x128] sm:$0xf]
    %v451 = vld [vmem:[#allocation9 + $0x12c] sm:$0xff]
    %v452 = vld [vmem:[#allocation9 + $0x134] sm:$0xf]
    %v453 = vld [vmem:[#allocation9 + $0x138] sm:$0xff]
    %v454 = vld [vmem:[#allocation9 + $0x140] sm:$0xf]
    %v455 = vld [vmem:[#allocation9 + $0x144] sm:$0xff]
    %v456 = vld [vmem:[#allocation9 + $0x14c] sm:$0xf]
    %v457 = vld [vmem:[#allocation9 + $0x150] sm:$0xff]
    %v458 = vld [vmem:[#allocation9 + $0x158] sm:$0xf]
    %v459 = vld [vmem:[#allocation9 + $0x15c] sm:$0xff]
    %v460 = vld [vmem:[#allocation9 + $0x164] sm:$0xf]
    %v461 = vld [vmem:[#allocation9 + $0x168] sm:$0xff]
    %v462 = vld [vmem:[#allocation9 + $0x170] sm:$0xf]
    %v463 = vld [vmem:[#allocation9 + $0x174] sm:$0xff]
    %v464 = vld [vmem:[#allocation9 + $0x17c] sm:$0xf]
    %v465 = vld [vmem:[#allocation9 + $0x180] sm:$0xff]
    %v466 = vld [vmem:[#allocation9 + $0x188] sm:$0xf]
    %v467 = vld [vmem:[#allocation9 + $0x18c] sm:$0xff]
    %v468 = vld [vmem:[#allocation9 + $0x194] sm:$0xf]
    %v469 = vld [vmem:[#allocation9 + $0x198] sm:$0xff]
    %v470 = vld [vmem:[#allocation9 + $0x1a0] sm:$0xf]
    %v471 = vld [vmem:[#allocation9 + $0x1a4] sm:$0xff]
    %v472 = vld [vmem:[#allocation9 + $0x1ac] sm:$0xf]
    %v473 = vld [vmem:[#allocation9 + $0x1b0] sm:$0xff]
    %v474 = vld [vmem:[#allocation9 + $0x1b8] sm:$0xf]
    %v475 = vld [vmem:[#allocation9 + $0x1bc] sm:$0xff]
    %v476 = vld [vmem:[#allocation9 + $0x1c4] sm:$0xf]
    %v477 = vld [vmem:[#allocation9 + $0x1c8] sm:$0xff]
    %v478 = vld [vmem:[#allocation9 + $0x1d0] sm:$0xf]
    %v479 = vld [vmem:[#allocation9 + $0x1d4] sm:$0xff]
    %v480 = vld [vmem:[#allocation9 + $0x1dc] sm:$0xf]
    %v481 = vld [vmem:[#allocation9 + $0x1e0] sm:$0xff]
    %v482 = vld [vmem:[#allocation9 + $0x1e8] sm:$0xf]
    %v483 = vld [vmem:[#allocation9 + $0x1ec] sm:$0xff]
    %v484 = vld [vmem:[#allocation9 + $0x1f4] sm:$0xf]
    %v485 = vld [vmem:[#allocation9 + $0x1f8] sm:$0xff]
    %v486 = vld [vmem:[#allocation9 + $0x200] sm:$0xf]
    %v487 = vld [vmem:[#allocation9 + $0x204] sm:$0xff]
    %v488 = vld [vmem:[#allocation9 + $0x20c] sm:$0xf]
    %v489 = vld [vmem:[#allocation9 + $0x210] sm:$0xff]
    %v490 = vld [vmem:[#allocation9 + $0x218] sm:$0xf]
    %v491 = vld [vmem:[#allocation9 + $0x21c] sm:$0xff]
    %v492 = vld [vmem:[#allocation9 + $0x224] sm:$0xf]
    %v493 = vld [vmem:[#allocation9 + $0x228] sm:$0xff]
    %v494 = vld [vmem:[#allocation9 + $0x230] sm:$0xf]
    %v495 = vld [vmem:[#allocation9 + $0x234] sm:$0xff]
    %v496 = vld [vmem:[#allocation9 + $0x23c] sm:$0xf]
    %v497 = vld [vmem:[#allocation9 + $0x240] sm:$0xff]
    %v498 = vld [vmem:[#allocation9 + $0x248] sm:$0xf]
    %v499 = vld [vmem:[#allocation9 + $0x24c] sm:$0xff]
    %v500 = vld [vmem:[#allocation9 + $0x254] sm:$0xf]
    %v501 = vld [vmem:[#allocation9 + $0x258] sm:$0xff]
    %v502 = vld [vmem:[#allocation9 + $0x260] sm:$0xf]
    %v503 = vld [vmem:[#allocation9 + $0x264] sm:$0xff]
    %v504 = vld [vmem:[#allocation9 + $0x26c] sm:$0xf]
    %v505 = vld [vmem:[#allocation9 + $0x270] sm:$0xff]
    %v506 = vld [vmem:[#allocation9 + $0x278] sm:$0xf]
    %v507 = vld [vmem:[#allocation9 + $0x27c] sm:$0xff]
    %v508 = vld [vmem:[#allocation9 + $0x284] sm:$0xf]
    %v509 = vld [vmem:[#allocation9 + $0x288] sm:$0xff]
    %v510 = vld [vmem:[#allocation9 + $0x290] sm:$0xf]
    %v511 = vld [vmem:[#allocation9 + $0x294] sm:$0xff]
    %v512 = vld [vmem:[#allocation9 + $0x29c] sm:$0xf]
    %v513 = vld [vmem:[#allocation9 + $0x2a0] sm:$0xff]
    %v514 = vld [vmem:[#allocation9 + $0x2a8] sm:$0xf]
    %v515 = vld [vmem:[#allocation9 + $0x2ac] sm:$0xff]
    %v516 = vld [vmem:[#allocation9 + $0x2b4] sm:$0xf]
    %v517 = vld [vmem:[#allocation9 + $0x2b8] sm:$0xff]
    %v518 = vld [vmem:[#allocation9 + $0x2c0] sm:$0xf]
    %v519 = vld [vmem:[#allocation9 + $0x2c4] sm:$0xff]
    %v520 = vld [vmem:[#allocation9 + $0x2cc] sm:$0xf]
    %v521 = vld [vmem:[#allocation9 + $0x2d0] sm:$0xff]
    %v522 = vld [vmem:[#allocation9 + $0x2d8] sm:$0xf]
    %v523 = vld [vmem:[#allocation9 + $0x2dc] sm:$0xff]
    %v524 = vld [vmem:[#allocation9 + $0x2e4] sm:$0xf]
    %v525 = vld [vmem:[#allocation9 + $0x2e8] sm:$0xff]
    %v526 = vld [vmem:[#allocation9 + $0x2f0] sm:$0xf]
    %v527 = vld [vmem:[#allocation9 + $0x2f4] sm:$0xff]
    %v528 = vld [vmem:[#allocation9 + $0x2fc] sm:$0xf]
    %v529 = vld [vmem:[#allocation10] sm:$0x7]
    %v531 = vperm.slane %v529, 0
    %v532 = vperm.slane %v529, 1
    %v533 = vperm.slane %v529, 2
    %v539 = vunpack.c.l.b16 %v397
    %v540 = vunpack.c.h.b16 %v397
    %v541 = vunpack.c.l.b16 %v398
    %v542 = vunpack.c.h.b16 %v398
    %v543 = vpack.c.b16 %v539, %v539
    %v544 = vpack.c.b16 %v540, %v540
    %v545 = vpack.c.b16 %v541, %v541
    %v546 = vpack.c.b16 %v542, %v542
    %v679 = vunpack.c.l.b16 %v401
    %v680 = vunpack.c.h.b16 %v401
    %v681 = vunpack.c.l.b16 %v402
    %v682 = vunpack.c.l.b16 %v403
    %v683 = vunpack.c.h.b16 %v403
    %v684 = vunpack.c.l.b16 %v404
    %v685 = vunpack.c.l.b16 %v405
    %v686 = vunpack.c.h.b16 %v405
    %v687 = vunpack.c.l.b16 %v406
    %v688 = vunpack.c.l.b16 %v407
    %v689 = vunpack.c.h.b16 %v407
    %v690 = vunpack.c.l.b16 %v408
    %v691 = vunpack.c.l.b16 %v409
    %v692 = vunpack.c.h.b16 %v409
    %v693 = vunpack.c.l.b16 %v410
    %v694 = vunpack.c.l.b16 %v411
    %v695 = vunpack.c.h.b16 %v411
    %v696 = vunpack.c.l.b16 %v412
    %v697 = vunpack.c.l.b16 %v413
    %v698 = vunpack.c.h.b16 %v413
    %v699 = vunpack.c.l.b16 %v414
    %v700 = vunpack.c.l.b16 %v415
    %v701 = vunpack.c.h.b16 %v415
    %v702 = vunpack.c.l.b16 %v416
    %v703 = vunpack.c.l.b16 %v417
    %v704 = vunpack.c.h.b16 %v417
    %v705 = vunpack.c.l.b16 %v418
    %v706 = vunpack.c.l.b16 %v419
    %v707 = vunpack.c.h.b16 %v419
    %v708 = vunpack.c.l.b16 %v420
    %v709 = vunpack.c.l.b16 %v421
    %v710 = vunpack.c.h.b16 %v421
    %v711 = vunpack.c.l.b16 %v422
    %v712 = vunpack.c.l.b16 %v423
    %v713 = vunpack.c.h.b16 %v423
    %v714 = vunpack.c.l.b16 %v424
    %v715 = vunpack.c.l.b16 %v425
    %v716 = vunpack.c.h.b16 %v425
    %v717 = vunpack.c.l.b16 %v426
    %v718 = vunpack.c.l.b16 %v427
    %v719 = vunpack.c.h.b16 %v427
    %v720 = vunpack.c.l.b16 %v428
    %v721 = vunpack.c.l.b16 %v429
    %v722 = vunpack.c.h.b16 %v429
    %v723 = vunpack.c.l.b16 %v430
    %v724 = vunpack.c.l.b16 %v431
    %v725 = vunpack.c.h.b16 %v431
    %v726 = vunpack.c.l.b16 %v432
    %v727 = vunpack.c.l.b16 %v433
    %v728 = vunpack.c.h.b16 %v433
    %v729 = vunpack.c.l.b16 %v434
    %v730 = vunpack.c.l.b16 %v435
    %v731 = vunpack.c.h.b16 %v435
    %v732 = vunpack.c.l.b16 %v436
    %v733 = vunpack.c.l.b16 %v437
    %v734 = vunpack.c.h.b16 %v437
    %v735 = vunpack.c.l.b16 %v438
    %v736 = vunpack.c.l.b16 %v439
    %v737 = vunpack.c.h.b16 %v439
    %v738 = vunpack.c.l.b16 %v440
    %v739 = vunpack.c.l.b16 %v441
    %v740 = vunpack.c.h.b16 %v441
    %v741 = vunpack.c.l.b16 %v442
    %v742 = vunpack.c.l.b16 %v443
    %v743 = vunpack.c.h.b16 %v443
    %v744 = vunpack.c.l.b16 %v444
    %v745 = vunpack.c.l.b16 %v445
    %v746 = vunpack.c.h.b16 %v445
    %v747 = vunpack.c.l.b16 %v446
    %v748 = vunpack.c.l.b16 %v447
    %v749 = vunpack.c.h.b16 %v447
    %v750 = vunpack.c.l.b16 %v448
    %v751 = vunpack.c.l.b16 %v449
    %v752 = vunpack.c.h.b16 %v449
    %v753 = vunpack.c.l.b16 %v450
    %v754 = vunpack.c.l.b16 %v451
    %v755 = vunpack.c.h.b16 %v451
    %v756 = vunpack.c.l.b16 %v452
    %v757 = vunpack.c.l.b16 %v453
    %v758 = vunpack.c.h.b16 %v453
    %v759 = vunpack.c.l.b16 %v454
    %v760 = vunpack.c.l.b16 %v455
    %v761 = vunpack.c.h.b16 %v455
    %v762 = vunpack.c.l.b16 %v456
    %v763 = vunpack.c.l.b16 %v457
    %v764 = vunpack.c.h.b16 %v457
    %v765 = vunpack.c.l.b16 %v458
    %v766 = vunpack.c.l.b16 %v459
    %v767 = vunpack.c.h.b16 %v459
    %v768 = vunpack.c.l.b16 %v460
    %v769 = vunpack.c.l.b16 %v461
    %v770 = vunpack.c.h.b16 %v461
    %v771 = vunpack.c.l.b16 %v462
    %v772 = vunpack.c.l.b16 %v463
    %v773 = vunpack.c.h.b16 %v463
    %v774 = vunpack.c.l.b16 %v464
    %v775 = vunpack.c.l.b16 %v465
    %v776 = vunpack.c.h.b16 %v465
    %v777 = vunpack.c.l.b16 %v466
    %v778 = vunpack.c.l.b16 %v467
    %v779 = vunpack.c.h.b16 %v467
    %v780 = vunpack.c.l.b16 %v468
    %v781 = vunpack.c.l.b16 %v469
    %v782 = vunpack.c.h.b16 %v469
    %v783 = vunpack.c.l.b16 %v470
    %v784 = vunpack.c.l.b16 %v471
    %v785 = vunpack.c.h.b16 %v471
    %v786 = vunpack.c.l.b16 %v472
    %v787 = vunpack.c.l.b16 %v473
    %v788 = vunpack.c.h.b16 %v473
    %v789 = vunpack.c.l.b16 %v474
    %v790 = vunpack.c.l.b16 %v475
    %v791 = vunpack.c.h.b16 %v475
    %v792 = vunpack.c.l.b16 %v476
    %v793 = vunpack.c.l.b16 %v477
    %v794 = vunpack.c.h.b16 %v477
    %v795 = vunpack.c.l.b16 %v478
    %v796 = vunpack.c.l.b16 %v479
    %v797 = vunpack.c.h.b16 %v479
    %v798 = vunpack.c.l.b16 %v480
    %v799 = vunpack.c.l.b16 %v481
    %v800 = vunpack.c.h.b16 %v481
    %v801 = vunpack.c.l.b16 %v482
    %v802 = vunpack.c.l.b16 %v483
    %v803 = vunpack.c.h.b16 %v483
    %v804 = vunpack.c.l.b16 %v484
    %v805 = vunpack.c.l.b16 %v485
    %v806 = vunpack.c.h.b16 %v485
    %v807 = vunpack.c.l.b16 %v486
    %v808 = vunpack.c.l.b16 %v487
    %v809 = vunpack.c.h.b16 %v487
    %v810 = vunpack.c.l.b16 %v488
    %v811 = vunpack.c.l.b16 %v489
    %v812 = vunpack.c.h.b16 %v489
    %v813 = vunpack.c.l.b16 %v490
    %v814 = vunpack.c.l.b16 %v491
    %v815 = vunpack.c.h.b16 %v491
    %v816 = vunpack.c.l.b16 %v492
    %v817 = vunpack.c.l.b16 %v493
    %v818 = vunpack.c.h.b16 %v493
    %v819 = vunpack.c.l.b16 %v494
    %v820 = vunpack.c.l.b16 %v495
    %v821 = vunpack.c.h.b16 %v495
    %v822 = vunpack.c.l.b16 %v496
    %v823 = vunpack.c.l.b16 %v497
    %v824 = vunpack.c.h.b16 %v497
    %v825 = vunpack.c.l.b16 %v498
    %v826 = vunpack.c.l.b16 %v499
    %v827 = vunpack.c.h.b16 %v499
    %v828 = vunpack.c.l.b16 %v500
    %v829 = vunpack.c.l.b16 %v501
    %v830 = vunpack.c.h.b16 %v501
    %v831 = vunpack.c.l.b16 %v502
    %v832 = vunpack.c.l.b16 %v503
    %v833 = vunpack.c.h.b16 %v503
    %v834 = vunpack.c.l.b16 %v504
    %v835 = vunpack.c.l.b16 %v505
    %v836 = vunpack.c.h.b16 %v505
    %v837 = vunpack.c.l.b16 %v506
    %v838 = vunpack.c.l.b16 %v507
    %v839 = vunpack.c.h.b16 %v507
    %v840 = vunpack.c.l.b16 %v508
    %v841 = vunpack.c.l.b16 %v509
    %v842 = vunpack.c.h.b16 %v509
    %v843 = vunpack.c.l.b16 %v510
    %v844 = vunpack.c.l.b16 %v511
    %v845 = vunpack.c.h.b16 %v511
    %v846 = vunpack.c.l.b16 %v512
    %v847 = vunpack.c.l.b16 %v513
    %v848 = vunpack.c.h.b16 %v513
    %v849 = vunpack.c.l.b16 %v514
    %v850 = vunpack.c.l.b16 %v515
    %v851 = vunpack.c.h.b16 %v515
    %v852 = vunpack.c.l.b16 %v516
    %v853 = vunpack.c.l.b16 %v517
    %v854 = vunpack.c.h.b16 %v517
    %v855 = vunpack.c.l.b16 %v518
    %v856 = vunpack.c.l.b16 %v519
    %v857 = vunpack.c.h.b16 %v519
    %v858 = vunpack.c.l.b16 %v520
    %v859 = vunpack.c.l.b16 %v521
    %v860 = vunpack.c.h.b16 %v521
    %v861 = vunpack.c.l.b16 %v522
    %v862 = vunpack.c.l.b16 %v523
    %v863 = vunpack.c.h.b16 %v523
    %v864 = vunpack.c.l.b16 %v524
    %v865 = vunpack.c.l.b16 %v525
    %v866 = vunpack.c.h.b16 %v525
    %v867 = vunpack.c.l.b16 %v526
    %v868 = vunpack.c.l.b16 %v527
    %v869 = vunpack.c.h.b16 %v527
    %v870 = vunpack.c.l.b16 %v528
    %v871 = vpack.c.b16 %v682, %v679
    %v872 = vpack.c.b16 %v683, %v680
    %v873 = vpack.c.b16 %v684, %v681
    %v874 = vpack.c.b16 %v688, %v685
    %v875 = vpack.c.b16 %v689, %v686
    %v876 = vpack.c.b16 %v690, %v687
    %v877 = vpack.c.b16 %v694, %v691
    %v878 = vpack.c.b16 %v695, %v692
    %v879 = vpack.c.b16 %v696, %v693
    %v880 = vpack.c.b16 %v700, %v697
    %v881 = vpack.c.b16 %v701, %v698
    %v882 = vpack.c.b16 %v702, %v699
    %v883 = vpack.c.b16 %v706, %v703
    %v884 = vpack.c.b16 %v707, %v704
    %v885 = vpack.c.b16 %v708, %v705
    %v886 = vpack.c.b16 %v712, %v709
    %v887 = vpack.c.b16 %v713, %v710
    %v888 = vpack.c.b16 %v714, %v711
    %v889 = vpack.c.b16 %v718, %v715
    %v890 = vpack.c.b16 %v719, %v716
    %v891 = vpack.c.b16 %v720, %v717
    %v892 = vpack.c.b16 %v724, %v721
    %v893 = vpack.c.b16 %v725, %v722
    %v894 = vpack.c.b16 %v726, %v723
    %v895 = vpack.c.b16 %v730, %v727
    %v896 = vpack.c.b16 %v731, %v728
    %v897 = vpack.c.b16 %v732, %v729
    %v898 = vpack.c.b16 %v736, %v733
    %v899 = vpack.c.b16 %v737, %v734
    %v900 = vpack.c.b16 %v738, %v735
    %v901 = vpack.c.b16 %v742, %v739
    %v902 = vpack.c.b16 %v743, %v740
    %v903 = vpack.c.b16 %v744, %v741
    %v904 = vpack.c.b16 %v748, %v745
    %v905 = vpack.c.b16 %v749, %v746
    %v906 = vpack.c.b16 %v750, %v747
    %v907 = vpack.c.b16 %v754, %v751
    %v908 = vpack.c.b16 %v755, %v752
    %v909 = vpack.c.b16 %v756, %v753
    %v910 = vpack.c.b16 %v760, %v757
    %v911 = vpack.c.b16 %v761, %v758
    %v912 = vpack.c.b16 %v762, %v759
    %v913 = vpack.c.b16 %v766, %v763
    %v914 = vpack.c.b16 %v767, %v764
    %v915 = vpack.c.b16 %v768, %v765
    %v916 = vpack.c.b16 %v772, %v769
    %v917 = vpack.c.b16 %v773, %v770
    %v918 = vpack.c.b16 %v774, %v771
    %v919 = vpack.c.b16 %v778, %v775
    %v920 = vpack.c.b16 %v779, %v776
    %v921 = vpack.c.b16 %v780, %v777
    %v922 = vpack.c.b16 %v784, %v781
    %v923 = vpack.c.b16 %v785, %v782
    %v924 = vpack.c.b16 %v786, %v783
    %v925 = vpack.c.b16 %v790, %v787
    %v926 = vpack.c.b16 %v791, %v788
    %v927 = vpack.c.b16 %v792, %v789
    %v928 = vpack.c.b16 %v796, %v793
    %v929 = vpack.c.b16 %v797, %v794
    %v930 = vpack.c.b16 %v798, %v795
    %v931 = vpack.c.b16 %v802, %v799
    %v932 = vpack.c.b16 %v803, %v800
    %v933 = vpack.c.b16 %v804, %v801
    %v934 = vpack.c.b16 %v808, %v805
    %v935 = vpack.c.b16 %v809, %v806
    %v936 = vpack.c.b16 %v810, %v807
    %v937 = vpack.c.b16 %v814, %v811
    %v938 = vpack.c.b16 %v815, %v812
    %v939 = vpack.c.b16 %v816, %v813
    %v940 = vpack.c.b16 %v820, %v817
    %v941 = vpack.c.b16 %v821, %v818
    %v942 = vpack.c.b16 %v822, %v819
    %v943 = vpack.c.b16 %v826, %v823
    %v944 = vpack.c.b16 %v827, %v824
    %v945 = vpack.c.b16 %v828, %v825
    %v946 = vpack.c.b16 %v832, %v829
    %v947 = vpack.c.b16 %v833, %v830
    %v948 = vpack.c.b16 %v834, %v831
    %v949 = vpack.c.b16 %v838, %v835
    %v950 = vpack.c.b16 %v839, %v836
    %v951 = vpack.c.b16 %v840, %v837
    %v952 = vpack.c.b16 %v844, %v841
    %v953 = vpack.c.b16 %v845, %v842
    %v954 = vpack.c.b16 %v846, %v843
    %v955 = vpack.c.b16 %v850, %v847
    %v956 = vpack.c.b16 %v851, %v848
    %v957 = vpack.c.b16 %v852, %v849
    %v958 = vpack.c.b16 %v856, %v853
    %v959 = vpack.c.b16 %v857, %v854
    %v960 = vpack.c.b16 %v858, %v855
    %v961 = vpack.c.b16 %v862, %v859
    %v962 = vpack.c.b16 %v863, %v860
    %v963 = vpack.c.b16 %v864, %v861
    %v964 = vpack.c.b16 %v868, %v865
    %v965 = vpack.c.b16 %v869, %v866
    %v966 = vpack.c.b16 %v870, %v867
    %1063 = vmatpush.bf16.msra.mxu0 %v892
    %1064 = vmatpush.bf16.msra.mxu0 %v889
    %1065 = vmatpush.bf16.msra.mxu0 %v886
    %1066 = vmatpush.bf16.msra.mxu0 %v883
    %1067 = vmatpush.bf16.msra.mxu0 %v880
    %1068 = vmatpush.bf16.msra.mxu0 %v877
    %1069 = vmatpush.bf16.msra.mxu0 %v874
    %1070 = vmatpush.bf16.msra.mxu0 %v871
    %1071 = vmatmul.bf16.gmra.mxu0 %v543
    %v1072 = vpop.f32.mrf.mxu0
    %v1073 = vadd.f32 %v531, %v1072
    %v1074 = vpop.f32.mrf.mxu0
    %1075 = vdwg.mxu0
    %1076 = vmatpush.bf16.msra.mxu0 %v916
    %1077 = vmatpush.bf16.msra.mxu0 %v913
    %1078 = vmatpush.bf16.msra.mxu0 %v910
    %1079 = vmatpush.bf16.msra.mxu0 %v907
    %1080 = vmatpush.bf16.msra.mxu0 %v904
    %1081 = vmatpush.bf16.msra.mxu0 %v901
    %1082 = vmatpush.bf16.msra.mxu0 %v898
    %1083 = vmatpush.bf16.msra.mxu0 %v895
    %1084 = vmatmul.bf16.gmra.mxu0 %v544
    %v1085 = vpop.f32.mrf.mxu0
    %v1086 = vadd.f32 %v1073, %v1085
    %v1087 = vpop.f32.mrf.mxu0
    %1088 = vdwg.mxu0
    %1089 = vmatpush.bf16.msra.mxu0 %v940
    %1090 = vmatpush.bf16.msra.mxu0 %v937
    %1091 = vmatpush.bf16.msra.mxu0 %v934
    %1092 = vmatpush.bf16.msra.mxu0 %v931
    %1093 = vmatpush.bf16.msra.mxu0 %v928
    %1094 = vmatpush.bf16.msra.mxu0 %v925
    %1095 = vmatpush.bf16.msra.mxu0 %v922
    %1096 = vmatpush.bf16.msra.mxu0 %v919
    %1097 = vmatmul.bf16.gmra.mxu0 %v545
    %v1098 = vpop.f32.mrf.mxu0
    %v1099 = vadd.f32 %v1086, %v1098
    %v1100 = vpop.f32.mrf.mxu0
    %1101 = vdwg.mxu0
    %1102 = vmatpush.bf16.msra.mxu0 %v964
    %1103 = vmatpush.bf16.msra.mxu0 %v961
    %1104 = vmatpush.bf16.msra.mxu0 %v958
    %1105 = vmatpush.bf16.msra.mxu0 %v955
    %1106 = vmatpush.bf16.msra.mxu0 %v952
    %1107 = vmatpush.bf16.msra.mxu0 %v949
    %1108 = vmatpush.bf16.msra.mxu0 %v946
    %1109 = vmatpush.bf16.msra.mxu0 %v943
    %1110 = vmatmul.bf16.gmra.mxu0 %v546
    %v1111 = vpop.f32.mrf.mxu0
    %v1112 = vadd.f32 %v1099, %v1111
    %v1113 = vpop.f32.mrf.mxu0
    %1114 = vdwg.mxu0
    %1115 = vmatpush.bf16.msra.mxu0 %v893
    %1116 = vmatpush.bf16.msra.mxu0 %v890
    %1117 = vmatpush.bf16.msra.mxu0 %v887
    %1118 = vmatpush.bf16.msra.mxu0 %v884
    %1119 = vmatpush.bf16.msra.mxu0 %v881
    %1120 = vmatpush.bf16.msra.mxu0 %v878
    %1121 = vmatpush.bf16.msra.mxu0 %v875
    %1122 = vmatpush.bf16.msra.mxu0 %v872
    %1123 = vmatmul.bf16.gmra.mxu0 %v543
    %v1124 = vpop.f32.mrf.mxu0
    %v1125 = vadd.f32 %v532, %v1124
    %v1126 = vpop.f32.mrf.mxu0
    %1127 = vdwg.mxu0
    %1128 = vmatpush.bf16.msra.mxu0 %v917
    %1129 = vmatpush.bf16.msra.mxu0 %v914
    %1130 = vmatpush.bf16.msra.mxu0 %v911
    %1131 = vmatpush.bf16.msra.mxu0 %v908
    %1132 = vmatpush.bf16.msra.mxu0 %v905
    %1133 = vmatpush.bf16.msra.mxu0 %v902
    %1134 = vmatpush.bf16.msra.mxu0 %v899
    %1135 = vmatpush.bf16.msra.mxu0 %v896
    %1136 = vmatmul.bf16.gmra.mxu0 %v544
    %v1137 = vpop.f32.mrf.mxu0
    %v1138 = vadd.f32 %v1125, %v1137
    %v1139 = vpop.f32.mrf.mxu0
    %1140 = vdwg.mxu0
    %1141 = vmatpush.bf16.msra.mxu0 %v941
    %1142 = vmatpush.bf16.msra.mxu0 %v938
    %1143 = vmatpush.bf16.msra.mxu0 %v935
    %1144 = vmatpush.bf16.msra.mxu0 %v932
    %1145 = vmatpush.bf16.msra.mxu0 %v929
    %1146 = vmatpush.bf16.msra.mxu0 %v926
    %1147 = vmatpush.bf16.msra.mxu0 %v923
    %1148 = vmatpush.bf16.msra.mxu0 %v920
    %1149 = vmatmul.bf16.gmra.mxu0 %v545
    %v1150 = vpop.f32.mrf.mxu0
    %v1151 = vadd.f32 %v1138, %v1150
    %v1152 = vpop.f32.mrf.mxu0
    %1153 = vdwg.mxu0
    %1154 = vmatpush.bf16.msra.mxu0 %v965
    %1155 = vmatpush.bf16.msra.mxu0 %v962
    %1156 = vmatpush.bf16.msra.mxu0 %v959
    %1157 = vmatpush.bf16.msra.mxu0 %v956
    %1158 = vmatpush.bf16.msra.mxu0 %v953
    %1159 = vmatpush.bf16.msra.mxu0 %v950
    %1160 = vmatpush.bf16.msra.mxu0 %v947
    %1161 = vmatpush.bf16.msra.mxu0 %v944
    %1162 = vmatmul.bf16.gmra.mxu0 %v546
    %v1163 = vpop.f32.mrf.mxu0
    %v1164 = vadd.f32 %v1151, %v1163
    %v1165 = vpop.f32.mrf.mxu0
    %1166 = vdwg.mxu0
    %1167 = vmatpush.bf16.msra.mxu0 %v894
    %1168 = vmatpush.bf16.msra.mxu0 %v891
    %1169 = vmatpush.bf16.msra.mxu0 %v888
    %1170 = vmatpush.bf16.msra.mxu0 %v885
    %1171 = vmatpush.bf16.msra.mxu0 %v882
    %1172 = vmatpush.bf16.msra.mxu0 %v879
    %1173 = vmatpush.bf16.msra.mxu0 %v876
    %1174 = vmatpush.bf16.msra.mxu0 %v873
    %1175 = vmatmul.bf16.gmra.mxu0 %v543
    %v1176 = vpop.f32.mrf.mxu0
    %v1177 = vadd.f32 %v533, %v1176
    %v1178 = vpop.f32.mrf.mxu0
    %1179 = vdwg.mxu0
    %1180 = vmatpush.bf16.msra.mxu0 %v918
    %1181 = vmatpush.bf16.msra.mxu0 %v915
    %1182 = vmatpush.bf16.msra.mxu0 %v912
    %1183 = vmatpush.bf16.msra.mxu0 %v909
    %1184 = vmatpush.bf16.msra.mxu0 %v906
    %1185 = vmatpush.bf16.msra.mxu0 %v903
    %1186 = vmatpush.bf16.msra.mxu0 %v900
    %1187 = vmatpush.bf16.msra.mxu0 %v897
    %1188 = vmatmul.bf16.gmra.mxu0 %v544
    %v1189 = vpop.f32.mrf.mxu0
    %v1190 = vadd.f32 %v1177, %v1189
    %v1191 = vpop.f32.mrf.mxu0
    %1192 = vdwg.mxu0
    %1193 = vmatpush.bf16.msra.mxu0 %v942
    %1194 = vmatpush.bf16.msra.mxu0 %v939
    %1195 = vmatpush.bf16.msra.mxu0 %v936
    %1196 = vmatpush.bf16.msra.mxu0 %v933
    %1197 = vmatpush.bf16.msra.mxu0 %v930
    %1198 = vmatpush.bf16.msra.mxu0 %v927
    %1199 = vmatpush.bf16.msra.mxu0 %v924
    %1200 = vmatpush.bf16.msra.mxu0 %v921
    %1201 = vmatmul.bf16.gmra.mxu0 %v545
    %v1202 = vpop.f32.mrf.mxu0
    %v1203 = vadd.f32 %v1190, %v1202
    %v1204 = vpop.f32.mrf.mxu0
    %1205 = vdwg.mxu0
    %1206 = vmatpush.bf16.msra.mxu0 %v966
    %1207 = vmatpush.bf16.msra.mxu0 %v963
    %1208 = vmatpush.bf16.msra.mxu0 %v960
    %1209 = vmatpush.bf16.msra.mxu0 %v957
    %1210 = vmatpush.bf16.msra.mxu0 %v954
    %1211 = vmatpush.bf16.msra.mxu0 %v951
    %1212 = vmatpush.bf16.msra.mxu0 %v948
    %1213 = vmatpush.bf16.msra.mxu0 %v945
    %1214 = vmatmul.bf16.gmra.mxu0 %v546
    %v1215 = vpop.f32.mrf.mxu0
    %v1216 = vadd.f32 %v1203, %v1215
    %v1217 = vpop.f32.mrf.mxu0
    %1218 = vdwg.mxu0
    %v1219 = vmax.f32 %v1112, 0.0
    %v1220 = vmax.f32 %v1164, 0.0
    %v1221 = vmax.f32 %v1216, 0.0
    %v1222 = vld [vmem:[#allocation12] sm:$0xff]
    %v1223 = vld [vmem:[#allocation12 + $0x8] sm:$0xf]
    %v1224 = vld [vmem:[#allocation12 + $0xc] sm:$0xff]
    %v1225 = vld [vmem:[#allocation12 + $0x14] sm:$0xf]
    %v1226 = vld [vmem:[#allocation12 + $0x18] sm:$0xff]
    %v1227 = vld [vmem:[#allocation12 + $0x20] sm:$0xf]
    %v1228 = vld [vmem:[#allocation12 + $0x24] sm:$0xff]
    %v1229 = vld [vmem:[#allocation12 + $0x2c] sm:$0xf]
    %v1230 = vld [vmem:[#allocation12 + $0x30] sm:$0xff]
    %v1231 = vld [vmem:[#allocation12 + $0x38] sm:$0xf]
    %v1232 = vld [vmem:[#allocation12 + $0x3c] sm:$0xff]
    %v1233 = vld [vmem:[#allocation12 + $0x44] sm:$0xf]
    %v1234 = vld [vmem:[#allocation12 + $0x48] sm:$0xff]
    %v1235 = vld [vmem:[#allocation12 + $0x50] sm:$0xf]
    %v1236 = vld [vmem:[#allocation12 + $0x54] sm:$0xff]
    %v1237 = vld [vmem:[#allocation12 + $0x5c] sm:$0xf]
    %v1238 = vld [vmem:[#allocation12 + $0x60] sm:$0xff]
    %v1239 = vld [vmem:[#allocation12 + $0x68] sm:$0xf]
    %v1240 = vld [vmem:[#allocation12 + $0x6c] sm:$0xff]
    %v1241 = vld [vmem:[#allocation12 + $0x74] sm:$0xf]
    %v1242 = vld [vmem:[#allocation12 + $0x78] sm:$0xff]
    %v1243 = vld [vmem:[#allocation12 + $0x80] sm:$0xf]
    %v1244 = vld [vmem:[#allocation12 + $0x84] sm:$0xff]
    %v1245 = vld [vmem:[#allocation12 + $0x8c] sm:$0xf]
    %v1246 = vld [vmem:[#allocation12 + $0x90] sm:$0xff]
    %v1247 = vld [vmem:[#allocation12 + $0x98] sm:$0xf]
    %v1248 = vld [vmem:[#allocation12 + $0x9c] sm:$0xff]
    %v1249 = vld [vmem:[#allocation12 + $0xa4] sm:$0xf]
    %v1250 = vld [vmem:[#allocation12 + $0xa8] sm:$0xff]
    %v1251 = vld [vmem:[#allocation12 + $0xb0] sm:$0xf]
    %v1252 = vld [vmem:[#allocation12 + $0xb4] sm:$0xff]
    %v1253 = vld [vmem:[#allocation12 + $0xbc] sm:$0xf]
    %v1254 = vld [vmem:[#allocation12 + $0xc0] sm:$0xff]
    %v1255 = vld [vmem:[#allocation12 + $0xc8] sm:$0xf]
    %v1256 = vld [vmem:[#allocation12 + $0xcc] sm:$0xff]
    %v1257 = vld [vmem:[#allocation12 + $0xd4] sm:$0xf]
    %v1258 = vld [vmem:[#allocation12 + $0xd8] sm:$0xff]
    %v1259 = vld [vmem:[#allocation12 + $0xe0] sm:$0xf]
    %v1260 = vld [vmem:[#allocation12 + $0xe4] sm:$0xff]
    %v1261 = vld [vmem:[#allocation12 + $0xec] sm:$0xf]
    %v1262 = vld [vmem:[#allocation12 + $0xf0] sm:$0xff]
    %v1263 = vld [vmem:[#allocation12 + $0xf8] sm:$0xf]
    %v1264 = vld [vmem:[#allocation12 + $0xfc] sm:$0xff]
    %v1265 = vld [vmem:[#allocation12 + $0x104] sm:$0xf]
    %v1266 = vld [vmem:[#allocation12 + $0x108] sm:$0xff]
    %v1267 = vld [vmem:[#allocation12 + $0x110] sm:$0xf]
    %v1268 = vld [vmem:[#allocation12 + $0x114] sm:$0xff]
    %v1269 = vld [vmem:[#allocation12 + $0x11c] sm:$0xf]
    %v1270 = vld [vmem:[#allocation12 + $0x120] sm:$0xff]
    %v1271 = vld [vmem:[#allocation12 + $0x128] sm:$0xf]
    %v1272 = vld [vmem:[#allocation12 + $0x12c] sm:$0xff]
    %v1273 = vld [vmem:[#allocation12 + $0x134] sm:$0xf]
    %v1274 = vld [vmem:[#allocation12 + $0x138] sm:$0xff]
    %v1275 = vld [vmem:[#allocation12 + $0x140] sm:$0xf]
    %v1276 = vld [vmem:[#allocation12 + $0x144] sm:$0xff]
    %v1277 = vld [vmem:[#allocation12 + $0x14c] sm:$0xf]
    %v1278 = vld [vmem:[#allocation12 + $0x150] sm:$0xff]
    %v1279 = vld [vmem:[#allocation12 + $0x158] sm:$0xf]
    %v1280 = vld [vmem:[#allocation12 + $0x15c] sm:$0xff]
    %v1281 = vld [vmem:[#allocation12 + $0x164] sm:$0xf]
    %v1282 = vld [vmem:[#allocation12 + $0x168] sm:$0xff]
    %v1283 = vld [vmem:[#allocation12 + $0x170] sm:$0xf]
    %v1284 = vld [vmem:[#allocation12 + $0x174] sm:$0xff]
    %v1285 = vld [vmem:[#allocation12 + $0x17c] sm:$0xf]
    %v1286 = vld [vmem:[#allocation12 + $0x180] sm:$0xff]
    %v1287 = vld [vmem:[#allocation12 + $0x188] sm:$0xf]
    %v1288 = vld [vmem:[#allocation12 + $0x18c] sm:$0xff]
    %v1289 = vld [vmem:[#allocation12 + $0x194] sm:$0xf]
    %v1290 = vld [vmem:[#allocation12 + $0x198] sm:$0xff]
    %v1291 = vld [vmem:[#allocation12 + $0x1a0] sm:$0xf]
    %v1292 = vld [vmem:[#allocation12 + $0x1a4] sm:$0xff]
    %v1293 = vld [vmem:[#allocation12 + $0x1ac] sm:$0xf]
    %v1294 = vld [vmem:[#allocation12 + $0x1b0] sm:$0xff]
    %v1295 = vld [vmem:[#allocation12 + $0x1b8] sm:$0xf]
    %v1296 = vld [vmem:[#allocation12 + $0x1bc] sm:$0xff]
    %v1297 = vld [vmem:[#allocation12 + $0x1c4] sm:$0xf]
    %v1298 = vld [vmem:[#allocation12 + $0x1c8] sm:$0xff]
    %v1299 = vld [vmem:[#allocation12 + $0x1d0] sm:$0xf]
    %v1300 = vld [vmem:[#allocation12 + $0x1d4] sm:$0xff]
    %v1301 = vld [vmem:[#allocation12 + $0x1dc] sm:$0xf]
    %v1302 = vld [vmem:[#allocation12 + $0x1e0] sm:$0xff]
    %v1303 = vld [vmem:[#allocation12 + $0x1e8] sm:$0xf]
    %v1304 = vld [vmem:[#allocation12 + $0x1ec] sm:$0xff]
    %v1305 = vld [vmem:[#allocation12 + $0x1f4] sm:$0xf]
    %v1306 = vld [vmem:[#allocation12 + $0x1f8] sm:$0xff]
    %v1307 = vld [vmem:[#allocation12 + $0x200] sm:$0xf]
    %v1308 = vld [vmem:[#allocation12 + $0x204] sm:$0xff]
    %v1309 = vld [vmem:[#allocation12 + $0x20c] sm:$0xf]
    %v1310 = vld [vmem:[#allocation12 + $0x210] sm:$0xff]
    %v1311 = vld [vmem:[#allocation12 + $0x218] sm:$0xf]
    %v1312 = vld [vmem:[#allocation12 + $0x21c] sm:$0xff]
    %v1313 = vld [vmem:[#allocation12 + $0x224] sm:$0xf]
    %v1314 = vld [vmem:[#allocation12 + $0x228] sm:$0xff]
    %v1315 = vld [vmem:[#allocation12 + $0x230] sm:$0xf]
    %v1316 = vld [vmem:[#allocation12 + $0x234] sm:$0xff]
    %v1317 = vld [vmem:[#allocation12 + $0x23c] sm:$0xf]
    %v1318 = vld [vmem:[#allocation12 + $0x240] sm:$0xff]
    %v1319 = vld [vmem:[#allocation12 + $0x248] sm:$0xf]
    %v1320 = vld [vmem:[#allocation12 + $0x24c] sm:$0xff]
    %v1321 = vld [vmem:[#allocation12 + $0x254] sm:$0xf]
    %v1322 = vld [vmem:[#allocation12 + $0x258] sm:$0xff]
    %v1323 = vld [vmem:[#allocation12 + $0x260] sm:$0xf]
    %v1324 = vld [vmem:[#allocation12 + $0x264] sm:$0xff]
    %v1325 = vld [vmem:[#allocation12 + $0x26c] sm:$0xf]
    %v1326 = vld [vmem:[#allocation12 + $0x270] sm:$0xff]
    %v1327 = vld [vmem:[#allocation12 + $0x278] sm:$0xf]
    %v1328 = vld [vmem:[#allocation12 + $0x27c] sm:$0xff]
    %v1329 = vld [vmem:[#allocation12 + $0x284] sm:$0xf]
    %v1330 = vld [vmem:[#allocation12 + $0x288] sm:$0xff]
    %v1331 = vld [vmem:[#allocation12 + $0x290] sm:$0xf]
    %v1332 = vld [vmem:[#allocation12 + $0x294] sm:$0xff]
    %v1333 = vld [vmem:[#allocation12 + $0x29c] sm:$0xf]
    %v1334 = vld [vmem:[#allocation12 + $0x2a0] sm:$0xff]
    %v1335 = vld [vmem:[#allocation12 + $0x2a8] sm:$0xf]
    %v1336 = vld [vmem:[#allocation12 + $0x2ac] sm:$0xff]
    %v1337 = vld [vmem:[#allocation12 + $0x2b4] sm:$0xf]
    %v1338 = vld [vmem:[#allocation12 + $0x2b8] sm:$0xff]
    %v1339 = vld [vmem:[#allocation12 + $0x2c0] sm:$0xf]
    %v1340 = vld [vmem:[#allocation12 + $0x2c4] sm:$0xff]
    %v1341 = vld [vmem:[#allocation12 + $0x2cc] sm:$0xf]
    %v1342 = vld [vmem:[#allocation12 + $0x2d0] sm:$0xff]
    %v1343 = vld [vmem:[#allocation12 + $0x2d8] sm:$0xf]
    %v1344 = vld [vmem:[#allocation12 + $0x2dc] sm:$0xff]
    %v1345 = vld [vmem:[#allocation12 + $0x2e4] sm:$0xf]
    %v1346 = vld [vmem:[#allocation12 + $0x2e8] sm:$0xff]
    %v1347 = vld [vmem:[#allocation12 + $0x2f0] sm:$0xf]
    %v1348 = vld [vmem:[#allocation12 + $0x2f4] sm:$0xff]
    %v1349 = vld [vmem:[#allocation12 + $0x2fc] sm:$0xf]
    %v1350 = vld [vmem:[%s7] sm:$0x7]
    %v1352 = vperm.slane %v1350, 0
    %v1353 = vperm.slane %v1350, 1
    %v1354 = vperm.slane %v1350, 2
    %v1360 = vunpack.c.l.b16 %v399
    %v1361 = vunpack.c.h.b16 %v399
    %v1362 = vunpack.c.l.b16 %v400
    %v1363 = vunpack.c.h.b16 %v400
    %v1364 = vpack.c.b16 %v1360, %v1360
    %v1365 = vpack.c.b16 %v1361, %v1361
    %v1366 = vpack.c.b16 %v1362, %v1362
    %v1367 = vpack.c.b16 %v1363, %v1363
    %v1500 = vunpack.c.l.b16 %v1222
    %v1501 = vunpack.c.h.b16 %v1222
    %v1502 = vunpack.c.l.b16 %v1223
    %v1503 = vunpack.c.l.b16 %v1224
    %v1504 = vunpack.c.h.b16 %v1224
    %v1505 = vunpack.c.l.b16 %v1225
    %v1506 = vunpack.c.l.b16 %v1226
    %v1507 = vunpack.c.h.b16 %v1226
    %v1508 = vunpack.c.l.b16 %v1227
    %v1509 = vunpack.c.l.b16 %v1228
    %v1510 = vunpack.c.h.b16 %v1228
    %v1511 = vunpack.c.l.b16 %v1229
    %v1512 = vunpack.c.l.b16 %v1230
    %v1513 = vunpack.c.h.b16 %v1230
    %v1514 = vunpack.c.l.b16 %v1231
    %v1515 = vunpack.c.l.b16 %v1232
    %v1516 = vunpack.c.h.b16 %v1232
    %v1517 = vunpack.c.l.b16 %v1233
    %v1518 = vunpack.c.l.b16 %v1234
    %v1519 = vunpack.c.h.b16 %v1234
    %v1520 = vunpack.c.l.b16 %v1235
    %v1521 = vunpack.c.l.b16 %v1236
    %v1522 = vunpack.c.h.b16 %v1236
    %v1523 = vunpack.c.l.b16 %v1237
    %v1524 = vunpack.c.l.b16 %v1238
    %v1525 = vunpack.c.h.b16 %v1238
    %v1526 = vunpack.c.l.b16 %v1239
    %v1527 = vunpack.c.l.b16 %v1240
    %v1528 = vunpack.c.h.b16 %v1240
    %v1529 = vunpack.c.l.b16 %v1241
    %v1530 = vunpack.c.l.b16 %v1242
    %v1531 = vunpack.c.h.b16 %v1242
    %v1532 = vunpack.c.l.b16 %v1243
    %v1533 = vunpack.c.l.b16 %v1244
    %v1534 = vunpack.c.h.b16 %v1244
    %v1535 = vunpack.c.l.b16 %v1245
    %v1536 = vunpack.c.l.b16 %v1246
    %v1537 = vunpack.c.h.b16 %v1246
    %v1538 = vunpack.c.l.b16 %v1247
    %v1539 = vunpack.c.l.b16 %v1248
    %v1540 = vunpack.c.h.b16 %v1248
    %v1541 = vunpack.c.l.b16 %v1249
    %v1542 = vunpack.c.l.b16 %v1250
    %v1543 = vunpack.c.h.b16 %v1250
    %v1544 = vunpack.c.l.b16 %v1251
    %v1545 = vunpack.c.l.b16 %v1252
    %v1546 = vunpack.c.h.b16 %v1252
    %v1547 = vunpack.c.l.b16 %v1253
    %v1548 = vunpack.c.l.b16 %v1254
    %v1549 = vunpack.c.h.b16 %v1254
    %v1550 = vunpack.c.l.b16 %v1255
    %v1551 = vunpack.c.l.b16 %v1256
    %v1552 = vunpack.c.h.b16 %v1256
    %v1553 = vunpack.c.l.b16 %v1257
    %v1554 = vunpack.c.l.b16 %v1258
    %v1555 = vunpack.c.h.b16 %v1258
    %v1556 = vunpack.c.l.b16 %v1259
    %v1557 = vunpack.c.l.b16 %v1260
    %v1558 = vunpack.c.h.b16 %v1260
    %v1559 = vunpack.c.l.b16 %v1261
    %v1560 = vunpack.c.l.b16 %v1262
    %v1561 = vunpack.c.h.b16 %v1262
    %v1562 = vunpack.c.l.b16 %v1263
    %v1563 = vunpack.c.l.b16 %v1264
    %v1564 = vunpack.c.h.b16 %v1264
    %v1565 = vunpack.c.l.b16 %v1265
    %v1566 = vunpack.c.l.b16 %v1266
    %v1567 = vunpack.c.h.b16 %v1266
    %v1568 = vunpack.c.l.b16 %v1267
    %v1569 = vunpack.c.l.b16 %v1268
    %v1570 = vunpack.c.h.b16 %v1268
    %v1571 = vunpack.c.l.b16 %v1269
    %v1572 = vunpack.c.l.b16 %v1270
    %v1573 = vunpack.c.h.b16 %v1270
    %v1574 = vunpack.c.l.b16 %v1271
    %v1575 = vunpack.c.l.b16 %v1272
    %v1576 = vunpack.c.h.b16 %v1272
    %v1577 = vunpack.c.l.b16 %v1273
    %v1578 = vunpack.c.l.b16 %v1274
    %v1579 = vunpack.c.h.b16 %v1274
    %v1580 = vunpack.c.l.b16 %v1275
    %v1581 = vunpack.c.l.b16 %v1276
    %v1582 = vunpack.c.h.b16 %v1276
    %v1583 = vunpack.c.l.b16 %v1277
    %v1584 = vunpack.c.l.b16 %v1278
    %v1585 = vunpack.c.h.b16 %v1278
    %v1586 = vunpack.c.l.b16 %v1279
    %v1587 = vunpack.c.l.b16 %v1280
    %v1588 = vunpack.c.h.b16 %v1280
    %v1589 = vunpack.c.l.b16 %v1281
    %v1590 = vunpack.c.l.b16 %v1282
    %v1591 = vunpack.c.h.b16 %v1282
    %v1592 = vunpack.c.l.b16 %v1283
    %v1593 = vunpack.c.l.b16 %v1284
    %v1594 = vunpack.c.h.b16 %v1284
    %v1595 = vunpack.c.l.b16 %v1285
    %v1596 = vunpack.c.l.b16 %v1286
    %v1597 = vunpack.c.h.b16 %v1286
    %v1598 = vunpack.c.l.b16 %v1287
    %v1599 = vunpack.c.l.b16 %v1288
    %v1600 = vunpack.c.h.b16 %v1288
    %v1601 = vunpack.c.l.b16 %v1289
    %v1602 = vunpack.c.l.b16 %v1290
    %v1603 = vunpack.c.h.b16 %v1290
    %v1604 = vunpack.c.l.b16 %v1291
    %v1605 = vunpack.c.l.b16 %v1292
    %v1606 = vunpack.c.h.b16 %v1292
    %v1607 = vunpack.c.l.b16 %v1293
    %v1608 = vunpack.c.l.b16 %v1294
    %v1609 = vunpack.c.h.b16 %v1294
    %v1610 = vunpack.c.l.b16 %v1295
    %v1611 = vunpack.c.l.b16 %v1296
    %v1612 = vunpack.c.h.b16 %v1296
    %v1613 = vunpack.c.l.b16 %v1297
    %v1614 = vunpack.c.l.b16 %v1298
    %v1615 = vunpack.c.h.b16 %v1298
    %v1616 = vunpack.c.l.b16 %v1299
    %v1617 = vunpack.c.l.b16 %v1300
    %v1618 = vunpack.c.h.b16 %v1300
    %v1619 = vunpack.c.l.b16 %v1301
    %v1620 = vunpack.c.l.b16 %v1302
    %v1621 = vunpack.c.h.b16 %v1302
    %v1622 = vunpack.c.l.b16 %v1303
    %v1623 = vunpack.c.l.b16 %v1304
    %v1624 = vunpack.c.h.b16 %v1304
    %v1625 = vunpack.c.l.b16 %v1305
    %v1626 = vunpack.c.l.b16 %v1306
    %v1627 = vunpack.c.h.b16 %v1306
    %v1628 = vunpack.c.l.b16 %v1307
    %v1629 = vunpack.c.l.b16 %v1308
    %v1630 = vunpack.c.h.b16 %v1308
    %v1631 = vunpack.c.l.b16 %v1309
    %v1632 = vunpack.c.l.b16 %v1310
    %v1633 = vunpack.c.h.b16 %v1310
    %v1634 = vunpack.c.l.b16 %v1311
    %v1635 = vunpack.c.l.b16 %v1312
    %v1636 = vunpack.c.h.b16 %v1312
    %v1637 = vunpack.c.l.b16 %v1313
    %v1638 = vunpack.c.l.b16 %v1314
    %v1639 = vunpack.c.h.b16 %v1314
    %v1640 = vunpack.c.l.b16 %v1315
    %v1641 = vunpack.c.l.b16 %v1316
    %v1642 = vunpack.c.h.b16 %v1316
    %v1643 = vunpack.c.l.b16 %v1317
    %v1644 = vunpack.c.l.b16 %v1318
    %v1645 = vunpack.c.h.b16 %v1318
    %v1646 = vunpack.c.l.b16 %v1319
    %v1647 = vunpack.c.l.b16 %v1320
    %v1648 = vunpack.c.h.b16 %v1320
    %v1649 = vunpack.c.l.b16 %v1321
    %v1650 = vunpack.c.l.b16 %v1322
    %v1651 = vunpack.c.h.b16 %v1322
    %v1652 = vunpack.c.l.b16 %v1323
    %v1653 = vunpack.c.l.b16 %v1324
    %v1654 = vunpack.c.h.b16 %v1324
    %v1655 = vunpack.c.l.b16 %v1325
    %v1656 = vunpack.c.l.b16 %v1326
    %v1657 = vunpack.c.h.b16 %v1326
    %v1658 = vunpack.c.l.b16 %v1327
    %v1659 = vunpack.c.l.b16 %v1328
    %v1660 = vunpack.c.h.b16 %v1328
    %v1661 = vunpack.c.l.b16 %v1329
    %v1662 = vunpack.c.l.b16 %v1330
    %v1663 = vunpack.c.h.b16 %v1330
    %v1664 = vunpack.c.l.b16 %v1331
    %v1665 = vunpack.c.l.b16 %v1332
    %v1666 = vunpack.c.h.b16 %v1332
    %v1667 = vunpack.c.l.b16 %v1333
    %v1668 = vunpack.c.l.b16 %v1334
    %v1669 = vunpack.c.h.b16 %v1334
    %v1670 = vunpack.c.l.b16 %v1335
    %v1671 = vunpack.c.l.b16 %v1336
    %v1672 = vunpack.c.h.b16 %v1336
    %v1673 = vunpack.c.l.b16 %v1337
    %v1674 = vunpack.c.l.b16 %v1338
    %v1675 = vunpack.c.h.b16 %v1338
    %v1676 = vunpack.c.l.b16 %v1339
    %v1677 = vunpack.c.l.b16 %v1340
    %v1678 = vunpack.c.h.b16 %v1340
    %v1679 = vunpack.c.l.b16 %v1341
    %v1680 = vunpack.c.l.b16 %v1342
    %v1681 = vunpack.c.h.b16 %v1342
    %v1682 = vunpack.c.l.b16 %v1343
    %v1683 = vunpack.c.l.b16 %v1344
    %v1684 = vunpack.c.h.b16 %v1344
    %v1685 = vunpack.c.l.b16 %v1345
    %v1686 = vunpack.c.l.b16 %v1346
    %v1687 = vunpack.c.h.b16 %v1346
    %v1688 = vunpack.c.l.b16 %v1347
    %v1689 = vunpack.c.l.b16 %v1348
    %v1690 = vunpack.c.h.b16 %v1348
    %v1691 = vunpack.c.l.b16 %v1349
    %v1692 = vpack.c.b16 %v1503, %v1500
    %v1693 = vpack.c.b16 %v1504, %v1501
    %v1694 = vpack.c.b16 %v1505, %v1502
    %v1695 = vpack.c.b16 %v1509, %v1506
    %v1696 = vpack.c.b16 %v1510, %v1507
    %v1697 = vpack.c.b16 %v1511, %v1508
    %v1698 = vpack.c.b16 %v1515, %v1512
    %v1699 = vpack.c.b16 %v1516, %v1513
    %v1700 = vpack.c.b16 %v1517, %v1514
    %v1701 = vpack.c.b16 %v1521, %v1518
    %v1702 = vpack.c.b16 %v1522, %v1519
    %v1703 = vpack.c.b16 %v1523, %v1520
    %v1704 = vpack.c.b16 %v1527, %v1524
    %v1705 = vpack.c.b16 %v1528, %v1525
    %v1706 = vpack.c.b16 %v1529, %v1526
    %v1707 = vpack.c.b16 %v1533, %v1530
    %v1708 = vpack.c.b16 %v1534, %v1531
    %v1709 = vpack.c.b16 %v1535, %v1532
    %v1710 = vpack.c.b16 %v1539, %v1536
    %v1711 = vpack.c.b16 %v1540, %v1537
    %v1712 = vpack.c.b16 %v1541, %v1538
    %v1713 = vpack.c.b16 %v1545, %v1542
    %v1714 = vpack.c.b16 %v1546, %v1543
    %v1715 = vpack.c.b16 %v1547, %v1544
    %v1716 = vpack.c.b16 %v1551, %v1548
    %v1717 = vpack.c.b16 %v1552, %v1549
    %v1718 = vpack.c.b16 %v1553, %v1550
    %v1719 = vpack.c.b16 %v1557, %v1554
    %v1720 = vpack.c.b16 %v1558, %v1555
    %v1721 = vpack.c.b16 %v1559, %v1556
    %v1722 = vpack.c.b16 %v1563, %v1560
    %v1723 = vpack.c.b16 %v1564, %v1561
    %v1724 = vpack.c.b16 %v1565, %v1562
    %v1725 = vpack.c.b16 %v1569, %v1566
    %v1726 = vpack.c.b16 %v1570, %v1567
    %v1727 = vpack.c.b16 %v1571, %v1568
    %v1728 = vpack.c.b16 %v1575, %v1572
    %v1729 = vpack.c.b16 %v1576, %v1573
    %v1730 = vpack.c.b16 %v1577, %v1574
    %v1731 = vpack.c.b16 %v1581, %v1578
    %v1732 = vpack.c.b16 %v1582, %v1579
    %v1733 = vpack.c.b16 %v1583, %v1580
    %v1734 = vpack.c.b16 %v1587, %v1584
    %v1735 = vpack.c.b16 %v1588, %v1585
    %v1736 = vpack.c.b16 %v1589, %v1586
    %v1737 = vpack.c.b16 %v1593, %v1590
    %v1738 = vpack.c.b16 %v1594, %v1591
    %v1739 = vpack.c.b16 %v1595, %v1592
    %v1740 = vpack.c.b16 %v1599, %v1596
    %v1741 = vpack.c.b16 %v1600, %v1597
    %v1742 = vpack.c.b16 %v1601, %v1598
    %v1743 = vpack.c.b16 %v1605, %v1602
    %v1744 = vpack.c.b16 %v1606, %v1603
    %v1745 = vpack.c.b16 %v1607, %v1604
    %v1746 = vpack.c.b16 %v1611, %v1608
    %v1747 = vpack.c.b16 %v1612, %v1609
    %v1748 = vpack.c.b16 %v1613, %v1610
    %v1749 = vpack.c.b16 %v1617, %v1614
    %v1750 = vpack.c.b16 %v1618, %v1615
    %v1751 = vpack.c.b16 %v1619, %v1616
    %v1752 = vpack.c.b16 %v1623, %v1620
    %v1753 = vpack.c.b16 %v1624, %v1621
    %v1754 = vpack.c.b16 %v1625, %v1622
    %v1755 = vpack.c.b16 %v1629, %v1626
    %v1756 = vpack.c.b16 %v1630, %v1627
    %v1757 = vpack.c.b16 %v1631, %v1628
    %v1758 = vpack.c.b16 %v1635, %v1632
    %v1759 = vpack.c.b16 %v1636, %v1633
    %v1760 = vpack.c.b16 %v1637, %v1634
    %v1761 = vpack.c.b16 %v1641, %v1638
    %v1762 = vpack.c.b16 %v1642, %v1639
    %v1763 = vpack.c.b16 %v1643, %v1640
    %v1764 = vpack.c.b16 %v1647, %v1644
    %v1765 = vpack.c.b16 %v1648, %v1645
    %v1766 = vpack.c.b16 %v1649, %v1646
    %v1767 = vpack.c.b16 %v1653, %v1650
    %v1768 = vpack.c.b16 %v1654, %v1651
    %v1769 = vpack.c.b16 %v1655, %v1652
    %v1770 = vpack.c.b16 %v1659, %v1656
    %v1771 = vpack.c.b16 %v1660, %v1657
    %v1772 = vpack.c.b16 %v1661, %v1658
    %v1773 = vpack.c.b16 %v1665, %v1662
    %v1774 = vpack.c.b16 %v1666, %v1663
    %v1775 = vpack.c.b16 %v1667, %v1664
    %v1776 = vpack.c.b16 %v1671, %v1668
    %v1777 = vpack.c.b16 %v1672, %v1669
    %v1778 = vpack.c.b16 %v1673, %v1670
    %v1779 = vpack.c.b16 %v1677, %v1674
    %v1780 = vpack.c.b16 %v1678, %v1675
    %v1781 = vpack.c.b16 %v1679, %v1676
    %v1782 = vpack.c.b16 %v1683, %v1680
    %v1783 = vpack.c.b16 %v1684, %v1681
    %v1784 = vpack.c.b16 %v1685, %v1682
    %v1785 = vpack.c.b16 %v1689, %v1686
    %v1786 = vpack.c.b16 %v1690, %v1687
    %v1787 = vpack.c.b16 %v1691, %v1688
    %1884 = vmatpush.bf16.msra.mxu0 %v1713
    %1885 = vmatpush.bf16.msra.mxu0 %v1710
    %1886 = vmatpush.bf16.msra.mxu0 %v1707
    %1887 = vmatpush.bf16.msra.mxu0 %v1704
    %1888 = vmatpush.bf16.msra.mxu0 %v1701
    %1889 = vmatpush.bf16.msra.mxu0 %v1698
    %1890 = vmatpush.bf16.msra.mxu0 %v1695
    %1891 = vmatpush.bf16.msra.mxu0 %v1692
    %1892 = vmatmul.bf16.gmra.mxu0 %v1364
    %v1893 = vpop.f32.mrf.mxu0
    %v1894 = vadd.f32 %v1352, %v1893
    %v1895 = vpop.f32.mrf.mxu0
    %1896 = vdwg.mxu0
    %1897 = vmatpush.bf16.msra.mxu0 %v1737
    %1898 = vmatpush.bf16.msra.mxu0 %v1734
    %1899 = vmatpush.bf16.msra.mxu0 %v1731
    %1900 = vmatpush.bf16.msra.mxu0 %v1728
    %1901 = vmatpush.bf16.msra.mxu0 %v1725
    %1902 = vmatpush.bf16.msra.mxu0 %v1722
    %1903 = vmatpush.bf16.msra.mxu0 %v1719
    %1904 = vmatpush.bf16.msra.mxu0 %v1716
    %1905 = vmatmul.bf16.gmra.mxu0 %v1365
    %v1906 = vpop.f32.mrf.mxu0
    %v1907 = vadd.f32 %v1894, %v1906
    %v1908 = vpop.f32.mrf.mxu0
    %1909 = vdwg.mxu0
    %1910 = vmatpush.bf16.msra.mxu0 %v1761
    %1911 = vmatpush.bf16.msra.mxu0 %v1758
    %1912 = vmatpush.bf16.msra.mxu0 %v1755
    %1913 = vmatpush.bf16.msra.mxu0 %v1752
    %1914 = vmatpush.bf16.msra.mxu0 %v1749
    %1915 = vmatpush.bf16.msra.mxu0 %v1746
    %1916 = vmatpush.bf16.msra.mxu0 %v1743
    %1917 = vmatpush.bf16.msra.mxu0 %v1740
    %1918 = vmatmul.bf16.gmra.mxu0 %v1366
    %v1919 = vpop.f32.mrf.mxu0
    %v1920 = vadd.f32 %v1907, %v1919
    %v1921 = vpop.f32.mrf.mxu0
    %1922 = vdwg.mxu0
    %1923 = vmatpush.bf16.msra.mxu0 %v1785
    %1924 = vmatpush.bf16.msra.mxu0 %v1782
    %1925 = vmatpush.bf16.msra.mxu0 %v1779
    %1926 = vmatpush.bf16.msra.mxu0 %v1776
    %1927 = vmatpush.bf16.msra.mxu0 %v1773
    %1928 = vmatpush.bf16.msra.mxu0 %v1770
    %1929 = vmatpush.bf16.msra.mxu0 %v1767
    %1930 = vmatpush.bf16.msra.mxu0 %v1764
    %1931 = vmatmul.bf16.gmra.mxu0 %v1367
    %v1932 = vpop.f32.mrf.mxu0
    %v1933 = vadd.f32 %v1920, %v1932
    %v1934 = vpop.f32.mrf.mxu0
    %1935 = vdwg.mxu0
    %1936 = vmatpush.bf16.msra.mxu0 %v1714
    %1937 = vmatpush.bf16.msra.mxu0 %v1711
    %1938 = vmatpush.bf16.msra.mxu0 %v1708
    %1939 = vmatpush.bf16.msra.mxu0 %v1705
    %1940 = vmatpush.bf16.msra.mxu0 %v1702
    %1941 = vmatpush.bf16.msra.mxu0 %v1699
    %1942 = vmatpush.bf16.msra.mxu0 %v1696
    %1943 = vmatpush.bf16.msra.mxu0 %v1693
    %1944 = vmatmul.bf16.gmra.mxu0 %v1364
    %v1945 = vpop.f32.mrf.mxu0
    %v1946 = vadd.f32 %v1353, %v1945
    %v1947 = vpop.f32.mrf.mxu0
    %1948 = vdwg.mxu0
    %1949 = vmatpush.bf16.msra.mxu0 %v1738
    %1950 = vmatpush.bf16.msra.mxu0 %v1735
    %1951 = vmatpush.bf16.msra.mxu0 %v1732
    %1952 = vmatpush.bf16.msra.mxu0 %v1729
    %1953 = vmatpush.bf16.msra.mxu0 %v1726
    %1954 = vmatpush.bf16.msra.mxu0 %v1723
    %1955 = vmatpush.bf16.msra.mxu0 %v1720
    %1956 = vmatpush.bf16.msra.mxu0 %v1717
    %1957 = vmatmul.bf16.gmra.mxu0 %v1365
    %v1958 = vpop.f32.mrf.mxu0
    %v1959 = vadd.f32 %v1946, %v1958
    %v1960 = vpop.f32.mrf.mxu0
    %1961 = vdwg.mxu0
    %1962 = vmatpush.bf16.msra.mxu0 %v1762
    %1963 = vmatpush.bf16.msra.mxu0 %v1759
    %1964 = vmatpush.bf16.msra.mxu0 %v1756
    %1965 = vmatpush.bf16.msra.mxu0 %v1753
    %1966 = vmatpush.bf16.msra.mxu0 %v1750
    %1967 = vmatpush.bf16.msra.mxu0 %v1747
    %1968 = vmatpush.bf16.msra.mxu0 %v1744
    %1969 = vmatpush.bf16.msra.mxu0 %v1741
    %1970 = vmatmul.bf16.gmra.mxu0 %v1366
    %v1971 = vpop.f32.mrf.mxu0
    %v1972 = vadd.f32 %v1959, %v1971
    %v1973 = vpop.f32.mrf.mxu0
    %1974 = vdwg.mxu0
    %1975 = vmatpush.bf16.msra.mxu0 %v1786
    %1976 = vmatpush.bf16.msra.mxu0 %v1783
    %1977 = vmatpush.bf16.msra.mxu0 %v1780
    %1978 = vmatpush.bf16.msra.mxu0 %v1777
    %1979 = vmatpush.bf16.msra.mxu0 %v1774
    %1980 = vmatpush.bf16.msra.mxu0 %v1771
    %1981 = vmatpush.bf16.msra.mxu0 %v1768
    %1982 = vmatpush.bf16.msra.mxu0 %v1765
    %1983 = vmatmul.bf16.gmra.mxu0 %v1367
    %v1984 = vpop.f32.mrf.mxu0
    %v1985 = vadd.f32 %v1972, %v1984
    %v1986 = vpop.f32.mrf.mxu0
    %1987 = vdwg.mxu0
    %1988 = vmatpush.bf16.msra.mxu0 %v1715
    %1989 = vmatpush.bf16.msra.mxu0 %v1712
    %1990 = vmatpush.bf16.msra.mxu0 %v1709
    %1991 = vmatpush.bf16.msra.mxu0 %v1706
    %1992 = vmatpush.bf16.msra.mxu0 %v1703
    %1993 = vmatpush.bf16.msra.mxu0 %v1700
    %1994 = vmatpush.bf16.msra.mxu0 %v1697
    %1995 = vmatpush.bf16.msra.mxu0 %v1694
    %1996 = vmatmul.bf16.gmra.mxu0 %v1364
    %v1997 = vpop.f32.mrf.mxu0
    %v1998 = vadd.f32 %v1354, %v1997
    %v1999 = vpop.f32.mrf.mxu0
    %2000 = vdwg.mxu0
    %2001 = vmatpush.bf16.msra.mxu0 %v1739
    %2002 = vmatpush.bf16.msra.mxu0 %v1736
    %2003 = vmatpush.bf16.msra.mxu0 %v1733
    %2004 = vmatpush.bf16.msra.mxu0 %v1730
    %2005 = vmatpush.bf16.msra.mxu0 %v1727
    %2006 = vmatpush.bf16.msra.mxu0 %v1724
    %2007 = vmatpush.bf16.msra.mxu0 %v1721
    %2008 = vmatpush.bf16.msra.mxu0 %v1718
    %2009 = vmatmul.bf16.gmra.mxu0 %v1365
    %v2010 = vpop.f32.mrf.mxu0
    %v2011 = vadd.f32 %v1998, %v2010
    %v2012 = vpop.f32.mrf.mxu0
    %2013 = vdwg.mxu0
    %2014 = vmatpush.bf16.msra.mxu0 %v1763
    %2015 = vmatpush.bf16.msra.mxu0 %v1760
    %2016 = vmatpush.bf16.msra.mxu0 %v1757
    %2017 = vmatpush.bf16.msra.mxu0 %v1754
    %2018 = vmatpush.bf16.msra.mxu0 %v1751
    %2019 = vmatpush.bf16.msra.mxu0 %v1748
    %2020 = vmatpush.bf16.msra.mxu0 %v1745
    %2021 = vmatpush.bf16.msra.mxu0 %v1742
    %2022 = vmatmul.bf16.gmra.mxu0 %v1366
    %v2023 = vpop.f32.mrf.mxu0
    %v2024 = vadd.f32 %v2011, %v2023
    %v2025 = vpop.f32.mrf.mxu0
    %2026 = vdwg.mxu0
    %2027 = vmatpush.bf16.msra.mxu0 %v1787
    %2028 = vmatpush.bf16.msra.mxu0 %v1784
    %2029 = vmatpush.bf16.msra.mxu0 %v1781
    %2030 = vmatpush.bf16.msra.mxu0 %v1778
    %2031 = vmatpush.bf16.msra.mxu0 %v1775
    %2032 = vmatpush.bf16.msra.mxu0 %v1772
    %2033 = vmatpush.bf16.msra.mxu0 %v1769
    %2034 = vmatpush.bf16.msra.mxu0 %v1766
    %2035 = vmatmul.bf16.gmra.mxu0 %v1367
    %v2036 = vpop.f32.mrf.mxu0
    %v2037 = vadd.f32 %v2024, %v2036
    %v2038 = vpop.f32.mrf.mxu0
    %2039 = vdwg.mxu0
    %v2040 = vmax.f32 %v1933, 0.0
    %v2041 = vmax.f32 %v1985, 0.0
    %v2042 = vmax.f32 %v2037, 0.0
    %v2043 = vld [vmem:[%s8] sm:$0x7]
    %v2044 = vunpack.c.l.bf16 %v2043
    %v2046 = vperm.slane %v2044, 0
    %v2047 = vperm.slane %v2044, 2
    %v2048 = vperm.slane %v2044, 4
    %v2052 = vperm.slane %v2046, 0
    %v2053 = vperm.slane %v2047, 0
    %v2054 = vperm.slane %v2048, 0
    %v2055 = vmul.f32 %v1219, %v2052
    %v2056 = vmul.f32 %v1220, %v2053
    %v2057 = vmul.f32 %v1221, %v2054
    %v2058 = vadd.f32 %v2055, %v2056
    %v2059 = vadd.f32 %v2058, %v2057
    %2060 = vadd.xlane.f32.xlu0 %v2059
    %v2061 = vpop.xlane.xlu0 %2060
    %v2062 = vld [vmem:[%s9] sm:$0x7]
    %v2063 = vunpack.c.l.bf16 %v2062
    %v2065 = vperm.slane %v2063, 0
    %v2066 = vperm.slane %v2063, 2
    %v2067 = vperm.slane %v2063, 4
    %v2071 = vperm.slane %v2065, 0
    %v2072 = vperm.slane %v2066, 0
    %v2073 = vperm.slane %v2067, 0
    %v2074 = vmul.f32 %v2040, %v2071
    %v2075 = vmul.f32 %v2041, %v2072
    %v2076 = vmul.f32 %v2042, %v2073
    %v2077 = vadd.f32 %v2074, %v2075
    %v2078 = vadd.f32 %v2077, %v2076
    %2079 = vadd.xlane.f32.xlu0 %v2078
    %v2080 = vpop.xlane.xlu0 %2079
    %vm2081 = vcmask 7168
    %v2082 = vsel %vm2081, %v2061, %v2080
    %v2083 = vld [vmem:[#allocation13] sm:$0x1]
    %v2085 = vperm.slane %v2083, 0
    %v2087 = vadd.f32 %v2082, %v2085
    %vm2088 = vcmask 15360
    %2089 = vst.msk [vmem:[%s11] sm:$0xff] %vm2088, %v2087
    // Predicated region
    $region78: #{critic_forward.1} parent=1 // pred_check
      _
    $region79: #{critic_forward.1} parent=1 // pred_check_branch
      %2091 = sbr.rel (0) target = $region81
    $region80: #{critic_forward.1} parent=1 // pred_region
      _
    $region81: #{critic_forward.1} parent=1 // pred_fallthru
      _
    // Predicated region
    $region82: #{critic_forward.1} parent=1 // pred_check
      _
    $region83: #{critic_forward.1} parent=1 // pred_check_branch
      %2093 = sbr.rel (0) target = $region85
    $region84: #{critic_forward.1} parent=1 // pred_region
      _
    $region85: #{critic_forward.1} parent=1 // pred_fallthru
      _
    %2094 = vsyncpa [#allocation3], 1
    %2095 = vsyncpa [#allocation5], 1
    %2096 = vsyncpa [#allocation8], 1
    %2097 = vsyncpa [#allocation11], 1
    %2098 = vsyncpa [#allocation14], 1

</llo_original>
